<compile_context>
chip_gen: v7x
topology: tpu7x:2x2x1
jax: 0.10.0
libtpu: 0.0.40
codegen_flags: <defaults>
</compile_context>

<pallas_src>
import functools

import jax
import jax.numpy as jnp
from jax.experimental import pallas as pl
from jax.experimental.pallas import tpu as pltpu


def _gsa_kernel(pv_ref, g_ref, wqkv_ref, bqkv_ref, watt_ref, batt_ref,
                o_ref,
                q_s, k_s, v_s, acc_s, m_s, s_s,
                *, cr, block_kv):
    ki = pl.program_id(1)
    n_kv = pl.num_programs(1)

    # ---- first kv step of each batch element: fused q/k/v conv GEMM + init.
    @pl.when(ki == 0)
    def _init():
        patches = pv_ref[0]                                    # (HW, Cin*49) bf16
        qkv = jnp.dot(patches, wqkv_ref[...],
                      preferred_element_type=jnp.float32) + bqkv_ref[...]
        q_s[...] = qkv[:, 0 * cr:1 * cr].astype(q_s.dtype)
        k_s[...] = qkv[:, 1 * cr:2 * cr].astype(k_s.dtype)
        v_s[...] = qkv[:, 2 * cr:3 * cr].astype(v_s.dtype)
        acc_s[...] = jnp.zeros_like(acc_s)
        m_s[...] = jnp.full_like(m_s, -jnp.inf)
        s_s[...] = jnp.zeros_like(s_s)

    # ---- stream one kv block: (HW, block_kv) logits tile, GLOBAL running
    #      max / sum (single scalar per batch element, not per row).
    start = pl.multiple_of(ki * block_kv, block_kv)
    k_blk = k_s[pl.ds(start, block_kv), :]                     # (block_kv, Cr) bf16
    v_blk = v_s[pl.ds(start, block_kv), :]                     # (block_kv, Cr) bf16

    # logits[j, i] = sum_c q[j, c] * k[i, c]  (torch query_key transposed; the
    # global softmax is invariant to the transpose).  No explicit .T.
    logits = jax.lax.dot_general(q_s[...], k_blk,
                                 (((1,), (1,)), ((), ())),
                                 preferred_element_type=jnp.float32)

    m_old = m_s[...]                                           # (1, 1)
    m_new = jnp.maximum(m_old, jnp.max(logits, keepdims=True))
    scale = jnp.exp(m_old - m_new)                             # exp(-inf)=0 on step 0
    e = jnp.exp(logits - m_new)                                # (HW, block_kv) f32
    s_s[...] = s_s[...] * scale + jnp.sum(e, keepdims=True)
    acc_s[...] = acc_s[...] * scale + jnp.dot(
        e.astype(v_blk.dtype), v_blk, preferred_element_type=jnp.float32)
    m_s[...] = m_new

    # ---- last kv step: normalize AFTER the PV matmul, 1x1 conv, residual.
    @pl.when(ki == n_kv - 1)
    def _finalize():
        # out_pre[c, j] = sum_r watt[c, r] * acc[j, r] -> lane-dense (Cin, HW)
        out_pre = jax.lax.dot_general(watt_ref[...], acc_s[...],
                                      (((1,), (1,)), ((), ())),
                                      preferred_element_type=jnp.float32)
        inv_s = pl.reciprocal(s_s[...], approx=True)           # (1, 1)
        att = out_pre * inv_s + batt_ref[...]                  # + (Cin, 1) bias
        g = g_ref[0]                                           # (Cin, HW)
        o_ref[0] = g * att + g


def _im2col(x, ksize):
    """x: (N, C, H, W) -> (N, H*W, C*ksize*ksize), zero 'same' padding."""
    n, c, h, w = x.shape
    pad = (ksize - 1) // 2
    xp = jnp.pad(x, ((0, 0), (0, 0), (pad, pad), (pad, pad)))
    taps = []
    for dh in range(ksize):
        for dw in range(ksize):
            taps.append(xp[:, :, dh:dh + h, dw:dw + w])
    pt = jnp.stack(taps, axis=2)                       # (N, C, k*k, H, W)
    pt = pt.reshape(n, c * ksize * ksize, h * w)       # flat tap order: (c, dh, dw)
    return pt.transpose(0, 2, 1)                       # (N, HW, C*k*k)


def global_spatial_attention(feature_maps, global_channel_output, params,
                             *, block_kv=None):
    n, c_in, h, w = feature_maps.shape
    hw = h * w
    wq, bq = params['q']
    wk, bk = params['k']
    wv, bv = params['v']
    watt, batt = params['att']
    cr = wq.shape[0]

    if block_kv is None:
        block_kv = hw if hw <= 512 else 512
    if hw % block_kv:
        block_kv = hw
    n_kv = hw // block_kv

    # ---- wrapper glue: single 7x7 im2col + weight/bias re-layout (bf16 GEMM operands).
    pv = _im2col(feature_maps, 7).astype(jnp.bfloat16)             # (N, HW, Cin*49)
    g = global_channel_output.reshape(n, c_in, hw).astype(jnp.float32)

    # Embed the 3x3 / 5x5 kernels into the 7x7 tap layout (zero-padded taps),
    # then concatenate q|k|v along the output-channel dim -> one conv GEMM.
    wq7 = jnp.pad(wq, ((0, 0), (0, 0), (2, 2), (2, 2)))
    wk7 = jnp.pad(wk, ((0, 0), (0, 0), (1, 1), (1, 1)))
    w_qkv = jnp.concatenate([wq7, wk7, wv], axis=0)                # (3Cr, Cin, 7, 7)
    w_qkv = w_qkv.reshape(3 * cr, c_in * 49).T.astype(jnp.bfloat16)  # (Cin*49, 3Cr)
    b_qkv = jnp.concatenate([bq, bk, bv]).reshape(1, 3 * cr).astype(jnp.float32)
    w_att = watt.reshape(c_in, cr).astype(jnp.float32)             # (Cin, Cr), tiny
    b_att = batt.reshape(c_in, 1).astype(jnp.float32)              # (Cin, 1)

    kernel = functools.partial(_gsa_kernel, cr=cr, block_kv=block_kv)

    out = pl.pallas_call(
        kernel,
        out_shape=jax.ShapeDtypeStruct((n, c_in, hw), jnp.float32),
        grid=(n, n_kv),
        in_specs=[
            pl.BlockSpec((1, hw, c_in * 49), lambda b, k: (b, 0, 0)),   # pv (resident per batch)
            pl.BlockSpec((1, c_in, hw), lambda b, k: (b, 0, 0)),        # g
            pl.BlockSpec((c_in * 49, 3 * cr), lambda b, k: (0, 0)),     # fused qkv weights
            pl.BlockSpec((1, 3 * cr), lambda b, k: (0, 0)),             # fused qkv bias
            pl.BlockSpec((c_in, cr), lambda b, k: (0, 0)),              # 1x1 att weight
            pl.BlockSpec((c_in, 1), lambda b, k: (0, 0)),               # 1x1 att bias
        ],
        out_specs=pl.BlockSpec((1, c_in, hw), lambda b, k: (b, 0, 0)),  # lane-dense HW
        scratch_shapes=[
            pltpu.VMEM((hw, cr), jnp.bfloat16),   # q
            pltpu.VMEM((hw, cr), jnp.bfloat16),   # k
            pltpu.VMEM((hw, cr), jnp.bfloat16),   # v
            pltpu.VMEM((hw, cr), jnp.float32),    # unnormalized PV accumulator
            pltpu.VMEM((1, 1), jnp.float32),      # global running max
            pltpu.VMEM((1, 1), jnp.float32),      # global running sum(exp)
        ],
        compiler_params=pltpu.CompilerParams(
            dimension_semantics=("parallel", "arbitrary"),
            vmem_limit_bytes=48 * 1024 * 1024),
    )(pv, g, w_qkv, b_qkv, w_att, b_att)

    return out.reshape(n, c_in, h, w)


# ----------------------- pure-JAX reference (for checking) -----------------------
def _conv2d_nchw(x, w, b, pad):
    out = jax.lax.conv_general_dilated(
        x, w, window_strides=(1, 1), padding=[(pad, pad), (pad, pad)],
        dimension_numbers=('NCHW', 'OIHW', 'NCHW'))
    return out + b[None, :, None, None]


def reference(feature_maps, g, params):
    wq, bq = params['q']
    wk, bk = params['k']
    wv, bv = params['v']
    watt, batt = params['att']
    n, _, h, w = feature_maps.shape
    query = _conv2d_nchw(feature_maps, wq, bq, 1)
    cr = query.shape[1]
    query = query.reshape(n, cr, -1)
    key = _conv2d_nchw(feature_maps, wk, bk, 2).reshape(n, cr, -1)
    qk = jnp.einsum('nci,ncj->nij', key, query)              # key^T @ query
    qk = jax.nn.softmax(qk.reshape(n, -1), axis=-1).reshape(n, h * w, h * w)
    value = _conv2d_nchw(feature_maps, wv, bv, 3).reshape(n, cr, -1)
    att = jnp.einsum('nci,nij->ncj', value, qk).reshape(n, cr, h, w)
    att = _conv2d_nchw(att, watt, batt, 0)
    return g * att + g


if __name__ == "__main__":
    key = jax.random.PRNGKey(0)
    n, c_in, cr, h, w = 2, 4, 4, 16, 16
    ks = jax.random.split(key, 10)
    feature_maps = jax.random.normal(ks[0], (n, c_in, h, w), jnp.float32)
    global_channel_output = jax.random.normal(ks[1], (n, c_in, h, w), jnp.float32)

    def conv_init(kw, kb, co, ci, ksize):
        fan_in = ci * ksize * ksize
        bound = 1.0 / (fan_in ** 0.5)
        wgt = jax.random.uniform(kw, (co, ci, ksize, ksize), jnp.float32, -bound, bound)
        bia = jax.random.uniform(kb, (co,), jnp.float32, -bound, bound)
        return wgt, bia

    params = {
        'q': conv_init(ks[2], ks[3], cr, c_in, 3),
        'k': conv_init(ks[4], ks[5], cr, c_in, 5),
        'v': conv_init(ks[6], ks[7], cr, c_in, 7),
        'att': conv_init(ks[8], ks[9], c_in, cr, 1),
    }

    # block_kv=64 with HW=256 -> 4 streamed kv steps (exercises the global
    # running-max/-sum rescaling path).
    out = global_spatial_attention(feature_maps, global_channel_output, params,
                                   block_kv=64)
    out = jax.block_until_ready(out)

    ref = reference(feature_maps, global_channel_output, params)
    max_err = float(jnp.max(jnp.abs(out - ref)))
    # bf16 MXU operands (f32 accumulation) -> looser tolerance than pure f32.
    assert jnp.allclose(out, ref, rtol=2e-2, atol=2e-2), f"max_err={max_err}"

    print("KERNEL_OK")
</pallas_src>

<mosaic_0001>
module attributes {stable_mosaic.version = 11 : i64} {
  func.func @_gsa_kernel(%arg0: i32, %arg1: i32, %arg2: memref<1x256x196xbf16, #tpu.memory_space<vmem>>, %arg3: memref<1x4x256xf32, #tpu.memory_space<vmem>>, %arg4: memref<196x12xbf16, #tpu.memory_space<vmem>>, %arg5: memref<1x12xf32, #tpu.memory_space<vmem>>, %arg6: memref<4x4xf32, #tpu.memory_space<vmem>>, %arg7: memref<4x1xf32, #tpu.memory_space<vmem>>, %arg8: memref<1x4x256xf32, #tpu.memory_space<vmem>>, %arg9: memref<256x4xbf16, #tpu.memory_space<vmem>>, %arg10: memref<256x4xbf16, #tpu.memory_space<vmem>>, %arg11: memref<256x4xbf16, #tpu.memory_space<vmem>>, %arg12: memref<256x4xf32, #tpu.memory_space<vmem>>, %arg13: memref<1x1xf32, #tpu.memory_space<vmem>>, %arg14: memref<1x1xf32, #tpu.memory_space<vmem>>) attributes {dimension_semantics = [#tpu.dimension_semantics<parallel>, #tpu.dimension_semantics<arbitrary>], iteration_bounds = array<i64: 2, 4>, scalar_prefetch = 0 : i64, scratch_operands = 6 : i64, tpu.core_type = #tpu.core_type<tc>, window_params = [{transform_indices = @transform_0, window_bounds = array<i64: 1, 256, 196>}, {transform_indices = @transform_1, window_bounds = array<i64: 1, 4, 256>}, {pipeline_mode = #tpu.pipeline_mode<synchronous>, transform_indices = @transform_2, window_bounds = array<i64: 196, 12>}, {pipeline_mode = #tpu.pipeline_mode<synchronous>, transform_indices = @transform_3, window_bounds = array<i64: 1, 12>}, {pipeline_mode = #tpu.pipeline_mode<synchronous>, transform_indices = @transform_4, window_bounds = array<i64: 4, 4>}, {pipeline_mode = #tpu.pipeline_mode<synchronous>, transform_indices = @transform_5, window_bounds = array<i64: 4, 1>}, {transform_indices = @transform_6, window_bounds = array<i64: 1, 4, 256>}]} {
    %c0_i32 = arith.constant 0 : i32
    %0 = arith.cmpi eq, %arg1, %c0_i32 : i32
    %1 = arith.extui %0 : i1 to i32
    %c0_i32_0 = arith.constant 0 : i32
    %2 = arith.cmpi ne, %1, %c0_i32_0 : i32
    scf.if %2 {
      %c0_20 = arith.constant 0 : index
      %c0_21 = arith.constant 0 : index
      %c0_22 = arith.constant 0 : index
      %43 = vector.load %arg2[%c0_20, %c0_21, %c0_22] : memref<1x256x196xbf16, #tpu.memory_space<vmem>>, vector<1x256x196xbf16>
      %44 = vector.shape_cast %43 : vector<1x256x196xbf16> to vector<256x196xbf16>
      %c0_23 = arith.constant 0 : index
      %c0_24 = arith.constant 0 : index
      %45 = vector.load %arg4[%c0_23, %c0_24] : memref<196x12xbf16, #tpu.memory_space<vmem>>, vector<196x12xbf16>
      %cst_25 = arith.constant dense<0.000000e+00> : vector<256x12xf32>
      %46 = tpu.matmul %44, %45, %cst_25 {dimension_numbers = #tpu.dot_dimension_numbers<[1], [0], [0], [1], [0, 0, 1, 1], [], []>} : vector<256x196xbf16>, vector<196x12xbf16>, vector<256x12xf32> -> vector<256x12xf32>
      %c0_26 = arith.constant 0 : index
      %c0_27 = arith.constant 0 : index
      %47 = vector.load %arg5[%c0_26, %c0_27] : memref<1x12xf32, #tpu.memory_space<vmem>>, vector<1x12xf32>
      %48 = vector.broadcast %47 : vector<1x12xf32> to vector<256x12xf32>
      %49 = arith.addf %46, %48 : vector<256x12xf32>
      %50 = vector.extract_strided_slice %49 {offsets = [0, 0], sizes = [256, 4], strides = [1, 1]} : vector<256x12xf32> to vector<256x4xf32>
      %51 = arith.truncf %50 : vector<256x4xf32> to vector<256x4xbf16>
      %c0_28 = arith.constant 0 : index
      %c0_29 = arith.constant 0 : index
      %52 = vector.load %arg9[%c0_28, %c0_29] : memref<256x4xbf16, #tpu.memory_space<vmem>>, vector<256x4xbf16>
      tpu.vector_store %arg9[%c0_28, %c0_29], %51 {strides = array<i32>} : memref<256x4xbf16, #tpu.memory_space<vmem>>, vector<256x4xbf16>,
      %53 = vector.extract_strided_slice %49 {offsets = [0, 4], sizes = [256, 4], strides = [1, 1]} : vector<256x12xf32> to vector<256x4xf32>
      %54 = arith.truncf %53 : vector<256x4xf32> to vector<256x4xbf16>
      %c0_30 = arith.constant 0 : index
      %c0_31 = arith.constant 0 : index
      %55 = vector.load %arg10[%c0_30, %c0_31] : memref<256x4xbf16, #tpu.memory_space<vmem>>, vector<256x4xbf16>
      tpu.vector_store %arg10[%c0_30, %c0_31], %54 {strides = array<i32>} : memref<256x4xbf16, #tpu.memory_space<vmem>>, vector<256x4xbf16>,
      %56 = vector.extract_strided_slice %49 {offsets = [0, 8], sizes = [256, 4], strides = [1, 1]} : vector<256x12xf32> to vector<256x4xf32>
      %57 = arith.truncf %56 : vector<256x4xf32> to vector<256x4xbf16>
      %c0_32 = arith.constant 0 : index
      %c0_33 = arith.constant 0 : index
      %58 = vector.load %arg11[%c0_32, %c0_33] : memref<256x4xbf16, #tpu.memory_space<vmem>>, vector<256x4xbf16>
      tpu.vector_store %arg11[%c0_32, %c0_33], %57 {strides = array<i32>} : memref<256x4xbf16, #tpu.memory_space<vmem>>, vector<256x4xbf16>,
      %cst_34 = arith.constant 0.000000e+00 : f32
      %59 = vector.broadcast %cst_34 : f32 to vector<256x4xf32>
      %c0_35 = arith.constant 0 : index
      %c0_36 = arith.constant 0 : index
      %60 = vector.load %arg12[%c0_35, %c0_36] : memref<256x4xf32, #tpu.memory_space<vmem>>, vector<256x4xf32>
      tpu.vector_store %arg12[%c0_35, %c0_36], %59 {strides = array<i32>} : memref<256x4xf32, #tpu.memory_space<vmem>>, vector<256x4xf32>,
      %cst_37 = arith.constant 0xFF800000 : f32
      %61 = vector.broadcast %cst_37 : f32 to vector<1x1xf32>
      %c0_38 = arith.constant 0 : index
      %c0_39 = arith.constant 0 : index
      %62 = vector.load %arg13[%c0_38, %c0_39] : memref<1x1xf32, #tpu.memory_space<vmem>>, vector<1x1xf32>
      tpu.vector_store %arg13[%c0_38, %c0_39], %61 {strides = array<i32>} : memref<1x1xf32, #tpu.memory_space<vmem>>, vector<1x1xf32>,
      %cst_40 = arith.constant 0.000000e+00 : f32
      %63 = vector.broadcast %cst_40 : f32 to vector<1x1xf32>
      %c0_41 = arith.constant 0 : index
      %c0_42 = arith.constant 0 : index
      %64 = vector.load %arg14[%c0_41, %c0_42] : memref<1x1xf32, #tpu.memory_space<vmem>>, vector<1x1xf32>
      tpu.vector_store %arg14[%c0_41, %c0_42], %63 {strides = array<i32>} : memref<1x1xf32, #tpu.memory_space<vmem>>, vector<1x1xf32>,
    } else {
    }
    %c64_i32 = arith.constant 64 : i32
    %3 = arith.muli %arg1, %c64_i32 : i32
    %4 = tpu.assume_multiple %3, 64 : i32
    %5 = arith.index_cast %4 : i32 to index
    %c0 = arith.constant 0 : index
    %6 = vector.load %arg10[%5, %c0] : memref<256x4xbf16, #tpu.memory_space<vmem>>, vector<64x4xbf16>
    %7 = arith.index_cast %4 : i32 to index
    %c0_1 = arith.constant 0 : index
    %8 = vector.load %arg11[%7, %c0_1] : memref<256x4xbf16, #tpu.memory_space<vmem>>, vector<64x4xbf16>
    %c0_2 = arith.constant 0 : index
    %c0_3 = arith.constant 0 : index
    %9 = vector.load %arg9[%c0_2, %c0_3] : memref<256x4xbf16, #tpu.memory_space<vmem>>, vector<256x4xbf16>
    %cst = arith.constant dense<0.000000e+00> : vector<256x64xf32>
    %10 = tpu.matmul %9, %6, %cst {dimension_numbers = #tpu.dot_dimension_numbers<[1], [1], [0], [0], [0, 0, 1, 0], [], []>} : vector<256x4xbf16>, vector<64x4xbf16>, vector<256x64xf32> -> vector<256x64xf32>
    %c0_4 = arith.constant 0 : index
    %c0_5 = arith.constant 0 : index
    %11 = vector.load %arg13[%c0_4, %c0_5] : memref<1x1xf32, #tpu.memory_space<vmem>>, vector<1x1xf32>
    %12 = vector.shape_cast %10 : vector<256x64xf32> to vector<1x256x64xf32>
    %cst_6 = arith.constant dense<0xFF800000> : vector<1xf32>
    %13 = vector.multi_reduction <maximumf>, %12, %cst_6 [1, 2] : vector<1x256x64xf32> to vector<1xf32>
    %14 = vector.shape_cast %13 : vector<1xf32> to vector<1x1x1xf32>
    %15 = vector.extract %14[0, 0, 0] : f32 from vector<1x1x1xf32>
    %16 = vector.broadcast %15 : f32 to vector<1x1xf32>
    %17 = arith.maximumf %11, %16 : vector<1x1xf32>
    %18 = arith.subf %11, %17 : vector<1x1xf32>
    %19 = math.exp %18 : vector<1x1xf32>
    %20 = vector.broadcast %17 : vector<1x1xf32> to vector<256x64xf32>
    %21 = arith.subf %10, %20 : vector<256x64xf32>
    %22 = math.exp %21 : vector<256x64xf32>
    %c0_7 = arith.constant 0 : index
    %c0_8 = arith.constant 0 : index
    %23 = vector.load %arg14[%c0_7, %c0_8] : memref<1x1xf32, #tpu.memory_space<vmem>>, vector<1x1xf32>
    %24 = arith.mulf %23, %19 : vector<1x1xf32>
    %25 = vector.shape_cast %22 : vector<256x64xf32> to vector<1x256x64xf32>
    %cst_9 = arith.constant dense<0.000000e+00> : vector<1xf32>
    %26 = vector.multi_reduction <add>, %25, %cst_9 [1, 2] : vector<1x256x64xf32> to vector<1xf32>
    %27 = vector.shape_cast %26 : vector<1xf32> to vector<1x1x1xf32>
    %28 = vector.extract %27[0, 0, 0] : f32 from vector<1x1x1xf32>
    %29 = vector.broadcast %28 : f32 to vector<1x1xf32>
    %30 = arith.addf %24, %29 : vector<1x1xf32>
    %c0_10 = arith.constant 0 : index
    %c0_11 = arith.constant 0 : index
    %31 = vector.load %arg14[%c0_10, %c0_11] : memref<1x1xf32, #tpu.memory_space<vmem>>, vector<1x1xf32>
    tpu.vector_store %arg14[%c0_10, %c0_11], %30 {strides = array<i32>} : memref<1x1xf32, #tpu.memory_space<vmem>>, vector<1x1xf32>,
    %c0_12 = arith.constant 0 : index
    %c0_13 = arith.constant 0 : index
    %32 = vector.load %arg12[%c0_12, %c0_13] : memref<256x4xf32, #tpu.memory_space<vmem>>, vector<256x4xf32>
    %33 = vector.broadcast %19 : vector<1x1xf32> to vector<256x4xf32>
    %34 = arith.mulf %32, %33 : vector<256x4xf32>
    %35 = arith.truncf %22 : vector<256x64xf32> to vector<256x64xbf16>
    %cst_14 = arith.constant dense<0.000000e+00> : vector<256x4xf32>
    %36 = tpu.matmul %35, %8, %cst_14 {dimension_numbers = #tpu.dot_dimension_numbers<[1], [0], [0], [1], [0, 0, 1, 1], [], []>} : vector<256x64xbf16>, vector<64x4xbf16>, vector<256x4xf32> -> vector<256x4xf32>
    %37 = arith.addf %34, %36 : vector<256x4xf32>
    %c0_15 = arith.constant 0 : index
    %c0_16 = arith.constant 0 : index
    %38 = vector.load %arg12[%c0_15, %c0_16] : memref<256x4xf32, #tpu.memory_space<vmem>>, vector<256x4xf32>
    tpu.vector_store %arg12[%c0_15, %c0_16], %37 {strides = array<i32>} : memref<256x4xf32, #tpu.memory_space<vmem>>, vector<256x4xf32>,
    %c0_17 = arith.constant 0 : index
    %c0_18 = arith.constant 0 : index
    %39 = vector.load %arg13[%c0_17, %c0_18] : memref<1x1xf32, #tpu.memory_space<vmem>>, vector<1x1xf32>
    tpu.vector_store %arg13[%c0_17, %c0_18], %17 {strides = array<i32>} : memref<1x1xf32, #tpu.memory_space<vmem>>, vector<1x1xf32>,
    %c3_i32 = arith.constant 3 : i32
    %40 = arith.cmpi eq, %arg1, %c3_i32 : i32
    %41 = arith.extui %40 : i1 to i32
    %c0_i32_19 = arith.constant 0 : i32
    %42 = arith.cmpi ne, %41, %c0_i32_19 : i32
    scf.if %42 {
      %c0_20 = arith.constant 0 : index
      %c0_21 = arith.constant 0 : index
      %43 = vector.load %arg6[%c0_20, %c0_21] : memref<4x4xf32, #tpu.memory_space<vmem>>, vector<4x4xf32>
      %c0_22 = arith.constant 0 : index
      %c0_23 = arith.constant 0 : index
      %44 = vector.load %arg12[%c0_22, %c0_23] : memref<256x4xf32, #tpu.memory_space<vmem>>, vector<256x4xf32>
      %cst_24 = arith.constant dense<0.000000e+00> : vector<4x256xf32>
      %45 = tpu.matmul %43, %44, %cst_24 {dimension_numbers = #tpu.dot_dimension_numbers<[1], [1], [0], [0], [0, 0, 1, 0], [], []>} : vector<4x4xf32>, vector<256x4xf32>, vector<4x256xf32> -> vector<4x256xf32>
      %c0_25 = arith.constant 0 : index
      %c0_26 = arith.constant 0 : index
      %46 = vector.load %arg14[%c0_25, %c0_26] : memref<1x1xf32, #tpu.memory_space<vmem>>, vector<1x1xf32>
      %47 = tpu.reciprocal %46 {approx = true} : vector<1x1xf32> -> vector<1x1xf32>
      %48 = vector.broadcast %47 : vector<1x1xf32> to vector<4x256xf32>
      %49 = arith.mulf %45, %48 : vector<4x256xf32>
      %c0_27 = arith.constant 0 : index
      %c0_28 = arith.constant 0 : index
      %50 = vector.load %arg7[%c0_27, %c0_28] : memref<4x1xf32, #tpu.memory_space<vmem>>, vector<4x1xf32>
      %51 = vector.broadcast %50 : vector<4x1xf32> to vector<4x256xf32>
      %52 = arith.addf %49, %51 : vector<4x256xf32>
      %c0_29 = arith.constant 0 : index
      %c0_30 = arith.constant 0 : index
      %c0_31 = arith.constant 0 : index
      %53 = vector.load %arg3[%c0_29, %c0_30, %c0_31] : memref<1x4x256xf32, #tpu.memory_space<vmem>>, vector<1x4x256xf32>
      %54 = vector.shape_cast %53 : vector<1x4x256xf32> to vector<4x256xf32>
      %55 = arith.mulf %54, %52 : vector<4x256xf32>
      %56 = arith.addf %55, %54 : vector<4x256xf32>
      %c0_32 = arith.constant 0 : index
      %c0_33 = arith.constant 0 : index
      %c0_34 = arith.constant 0 : index
      %57 = vector.load %arg8[%c0_32, %c0_33, %c0_34] : memref<1x4x256xf32, #tpu.memory_space<vmem>>, vector<1x4x256xf32>
      %58 = vector.shape_cast %57 : vector<1x4x256xf32> to vector<4x256xf32>
      %59 = vector.shape_cast %56 : vector<4x256xf32> to vector<1x4x256xf32>
      tpu.vector_store %arg8[%c0_32, %c0_33, %c0_34], %59 {strides = array<i32>} : memref<1x4x256xf32, #tpu.memory_space<vmem>>, vector<1x4x256xf32>,
    } else {
    }
    return
  }
  func.func @transform_0(%arg0: i32, %arg1: i32) -> (i32, i32, i32) {
    %c0_i32 = arith.constant 0 : i32
    %c0_i32_0 = arith.constant 0 : i32
    %c0_i32_1 = arith.constant 0 : i32
    return %arg0, %c0_i32, %c0_i32_0 : i32, i32, i32
  }
  func.func @transform_1(%arg0: i32, %arg1: i32) -> (i32, i32, i32) {
    %c0_i32 = arith.constant 0 : i32
    %c0_i32_0 = arith.constant 0 : i32
    %c0_i32_1 = arith.constant 0 : i32
    return %arg0, %c0_i32, %c0_i32_0 : i32, i32, i32
  }
  func.func @transform_2(%arg0: i32, %arg1: i32) -> (i32, i32) {
    %c0_i32 = arith.constant 0 : i32
    %c0_i32_0 = arith.constant 0 : i32
    %c0_i32_1 = arith.constant 0 : i32
    return %c0_i32, %c0_i32_0 : i32, i32
  }
  func.func @transform_3(%arg0: i32, %arg1: i32) -> (i32, i32) {
    %c0_i32 = arith.constant 0 : i32
    %c0_i32_0 = arith.constant 0 : i32
    %c0_i32_1 = arith.constant 0 : i32
    return %c0_i32, %c0_i32_0 : i32, i32
  }
  func.func @transform_4(%arg0: i32, %arg1: i32) -> (i32, i32) {
    %c0_i32 = arith.constant 0 : i32
    %c0_i32_0 = arith.constant 0 : i32
    %c0_i32_1 = arith.constant 0 : i32
    return %c0_i32, %c0_i32_0 : i32, i32
  }
  func.func @transform_5(%arg0: i32, %arg1: i32) -> (i32, i32) {
    %c0_i32 = arith.constant 0 : i32
    %c0_i32_0 = arith.constant 0 : i32
    %c0_i32_1 = arith.constant 0 : i32
    return %c0_i32, %c0_i32_0 : i32, i32
  }
  func.func @transform_6(%arg0: i32, %arg1: i32) -> (i32, i32, i32) {
    %c0_i32 = arith.constant 0 : i32
    %c0_i32_0 = arith.constant 0 : i32
    %c0_i32_1 = arith.constant 0 : i32
    return %arg0, %c0_i32, %c0_i32_0 : i32, i32, i32
  }
}

</mosaic_0001>

<llo_original>
// kernel: tpu_custom_call.1
$region0: #{tpu_custom_call.1}
  #allocation0 [shape = 'u32[]', space=smem, size = 0x4, offset = 0x4, fixed_abs, tag = 'smem constant byte address 0x4 - core index']
  #allocation1 [shape = 'u32[144,128]{1,0:T(1,128)}', space=vmem, size = 0x12000, scoped, tag = 'internal scratch']
  #allocation2 [shape = 'bf16[256,4]{1,0:T(16,128)(2,1)}', space=vmem, size = 0x10000, scoped, tag = 'scratch operand']
  #allocation3 [shape = 'bf16[256,4]{1,0:T(16,128)(2,1)}', space=vmem, size = 0x10000, scoped, tag = 'scratch operand']
  #allocation4 [shape = 'bf16[256,4]{1,0:T(16,128)(2,1)}', space=vmem, size = 0x10000, scoped, tag = 'scratch operand']
  #allocation5 [shape = 'f32[256,4]{1,0:T(8,128)}', space=vmem, size = 0x20000, scoped, tag = 'scratch operand']
  #allocation6 [shape = 'f32[1,1]{1,0:T(1,128)}', space=vmem, size = 0x200, scoped, tag = 'scratch operand']
  #allocation7 [shape = 'f32[1,1]{1,0:T(1,128)}', space=vmem, size = 0x200, scoped, tag = 'scratch operand']
  %s0 = inlined_call_operand.vmem [shape: bf16[2,256,196], index: 0, kind: input, shape index: {}]
  %s1 = inlined_call_operand.vmem [shape: f32[2,4,256], index: 1, kind: input, shape index: {}]
  %s2 = inlined_call_operand.vmem [shape: bf16[196,12], index: 2, kind: input, shape index: {}]
  %s3 = inlined_call_operand.vmem [shape: f32[1,12], index: 3, kind: input, shape index: {}]
  %s4 = inlined_call_operand.vmem [shape: f32[4,4], index: 4, kind: input, shape index: {}]
  %s5 = inlined_call_operand.vmem [shape: f32[4,1], index: 5, kind: input, shape index: {}]
  %s6 = inlined_call_operand.hbm [shape: f32[2,4,256], index: 6, kind: output, shape index: {}]
  %s7 = sld [smem:[#allocation0]]
  $region65: #{tpu_custom_call.1} parent=0
    _
  %s9 = ssub.s32 1, %s7
  %s10 = scalar_select 0, %s9, %s7
  $region1: #{tpu_custom_call.1} parent=0
    #allocation8 [shape = 'u8[8192]{0}', space=vmem, size = 0x2000, scoped, tag = 'output window, operand 0']
    #allocation9 [shape = 's32[2]{0}', space=sflag, size = 0x8, scoped, tag = 'scoped memory for tpu_custom_call.1']
    %11 = vsyncpa [#allocation9], 0
    %s12 = scalar_lea.sflag [#allocation9], 1
    %13 = vsyncpa %s12, 0
    loop: start=0, step=1, limit=10
    $region2: #{tpu_custom_call.1} parent=1 // loop_pre_header
      _
    $region3: #{tpu_custom_call.1} parent=1 // loop_header
      %s15 = sphi 0, %s19
      %p16 = scmp.ge.s32.totalorder %s15, 10
      %s22 = sphi 0, %s34
      %s23 = sphi 0, %s30
      %s24 = sphi 0, %s22
      %s25 = sphi 0, %s23
      %s26 = sphi 0, %s24
      %s27 = sphi 0, %s25
      %s37 = sphi 0, %s39
      %s40 = sphi 0, %s37
      %s41 = sphi 0, %s40
      %s57 = sphi 0, %s41
      %s63 = sphi 0, %s65
      %s66 = sphi 0, %s63
      %s67 = sphi 0, %s66
      %s83 = sphi 0, %s67
      %s87 = sphi 0, %s87
      %s89 = sphi 0, %s87
      %s90 = sphi 0, %s89
      %s104 = sphi 0, %s90
      %s108 = sphi 0, %s108
      %s110 = sphi 0, %s108
      %s111 = sphi 0, %s110
      %s125 = sphi 0, %s111
      %s129 = sphi 0, %s129
      %s131 = sphi 0, %s129
      %s132 = sphi 0, %s131
      %s146 = sphi 0, %s132
      %s150 = sphi 0, %s150
      %s152 = sphi 0, %s150
      %s153 = sphi 0, %s152
      %s167 = sphi 0, %s153
      %s173 = sphi 0, %s175
      %s176 = sphi 0, %s173
      %s177 = sphi 0, %s176
      %s193 = sphi 0, %s177
    $region4: #{tpu_custom_call.1} parent=1 // loop_header_branch
      %18 = sbr.rel (%p16) target = $region8
    $region5: #{tpu_custom_call.1} parent=1 // loop_body
      %s20 = ssub.s32 %s15, 1
      %s21 = ssub.s32 %s15, 2
      %s28 = sadd.s32 1, %s23
      %p29 = scmp.ge.s32.totalorder %s28, 4
      %s30 = scalar_select %p29, 0, %s28
      %s31 = sadd.s32 1, %s22
      %s32 = scalar_select %p29, %s31, %s22
      %p33 = scmp.ge.s32.totalorder %s32, 2
      %s34 = scalar_select %p33, 0, %s32
      %s35 = ssub.s32 %s22, %s34
      %p36 = scmp.eq.s32.totalorder %s35, 0
      %s38 = sadd.s32 %s37, 1
      %s39 = scalar_select %p36, %s37, %s38
      %p42 = pneg %p36
      %p43 = scmp.eq.s32.totalorder %s15, 7
      %p44 = por %p42, %p43
      %p45 = scmp.ne.s32.totalorder %s37, %s40
      %p46 = scmp.eq.s32.totalorder %s15, 0
      %p47 = por %p45, %p46
      %p48 = scmp.ne.s32.totalorder %s37, %s40
      %p49 = scmp.eq.s32.totalorder %s20, 7
      %p50 = por %p48, %p49
      %p51 = scmp.ne.s32.totalorder %s40, %s41
      %p52 = scmp.eq.s32.totalorder %s20, 0
      %p53 = por %p51, %p52
      %p54 = scmp.ne.s32.totalorder %s40, %s41
      %p55 = scmp.eq.s32.totalorder %s21, 7
      %p56 = por %p54, %p55
      %p58 = scmp.ne.s32.totalorder %s41, %s57
      %p59 = scmp.eq.s32.totalorder %s21, 0
      %p60 = por %p58, %p59
      %s61 = ssub.s32 %s22, %s34
      %p62 = scmp.eq.s32.totalorder %s61, 0
      %s64 = sadd.s32 %s63, 1
      %s65 = scalar_select %p62, %s63, %s64
      %p68 = pneg %p62
      %p69 = scmp.eq.s32.totalorder %s15, 7
      %p70 = por %p68, %p69
      %p71 = scmp.ne.s32.totalorder %s63, %s66
      %p72 = scmp.eq.s32.totalorder %s15, 0
      %p73 = por %p71, %p72
      %p74 = scmp.ne.s32.totalorder %s63, %s66
      %p75 = scmp.eq.s32.totalorder %s20, 7
      %p76 = por %p74, %p75
      %p77 = scmp.ne.s32.totalorder %s66, %s67
      %p78 = scmp.eq.s32.totalorder %s20, 0
      %p79 = por %p77, %p78
      %p80 = scmp.ne.s32.totalorder %s66, %s67
      %p81 = scmp.eq.s32.totalorder %s21, 7
      %p82 = por %p80, %p81
      %p84 = scmp.ne.s32.totalorder %s67, %s83
      %p85 = scmp.eq.s32.totalorder %s21, 0
      %p86 = por %p84, %p85
      %s88 = sadd.s32 %s87, 1
      %p91 = scmp.eq.s32.totalorder %s15, 7
      %p92 = scmp.ne.s32.totalorder %s87, %s89
      %p93 = scmp.eq.s32.totalorder %s15, 0
      %p94 = por %p92, %p93
      %p95 = scmp.ne.s32.totalorder %s87, %s89
      %p96 = scmp.eq.s32.totalorder %s20, 7
      %p97 = por %p95, %p96
      %p98 = scmp.ne.s32.totalorder %s89, %s90
      %p99 = scmp.eq.s32.totalorder %s20, 0
      %p100 = por %p98, %p99
      %p101 = scmp.ne.s32.totalorder %s89, %s90
      %p102 = scmp.eq.s32.totalorder %s21, 7
      %p103 = por %p101, %p102
      %p105 = scmp.ne.s32.totalorder %s90, %s104
      %p106 = scmp.eq.s32.totalorder %s21, 0
      %p107 = por %p105, %p106
      %s109 = sadd.s32 %s108, 1
      %p112 = scmp.eq.s32.totalorder %s15, 7
      %p113 = scmp.ne.s32.totalorder %s108, %s110
      %p114 = scmp.eq.s32.totalorder %s15, 0
      %p115 = por %p113, %p114
      %p116 = scmp.ne.s32.totalorder %s108, %s110
      %p117 = scmp.eq.s32.totalorder %s20, 7
      %p118 = por %p116, %p117
      %p119 = scmp.ne.s32.totalorder %s110, %s111
      %p120 = scmp.eq.s32.totalorder %s20, 0
      %p121 = por %p119, %p120
      %p122 = scmp.ne.s32.totalorder %s110, %s111
      %p123 = scmp.eq.s32.totalorder %s21, 7
      %p124 = por %p122, %p123
      %p126 = scmp.ne.s32.totalorder %s111, %s125
      %p127 = scmp.eq.s32.totalorder %s21, 0
      %p128 = por %p126, %p127
      %s130 = sadd.s32 %s129, 1
      %p133 = scmp.eq.s32.totalorder %s15, 7
      %p134 = scmp.ne.s32.totalorder %s129, %s131
      %p135 = scmp.eq.s32.totalorder %s15, 0
      %p136 = por %p134, %p135
      %p137 = scmp.ne.s32.totalorder %s129, %s131
      %p138 = scmp.eq.s32.totalorder %s20, 7
      %p139 = por %p137, %p138
      %p140 = scmp.ne.s32.totalorder %s131, %s132
      %p141 = scmp.eq.s32.totalorder %s20, 0
      %p142 = por %p140, %p141
      %p143 = scmp.ne.s32.totalorder %s131, %s132
      %p144 = scmp.eq.s32.totalorder %s21, 7
      %p145 = por %p143, %p144
      %p147 = scmp.ne.s32.totalorder %s132, %s146
      %p148 = scmp.eq.s32.totalorder %s21, 0
      %p149 = por %p147, %p148
      %s151 = sadd.s32 %s150, 1
      %p154 = scmp.eq.s32.totalorder %s15, 7
      %p155 = scmp.ne.s32.totalorder %s150, %s152
      %p156 = scmp.eq.s32.totalorder %s15, 0
      %p157 = por %p155, %p156
      %p158 = scmp.ne.s32.totalorder %s150, %s152
      %p159 = scmp.eq.s32.totalorder %s20, 7
      %p160 = por %p158, %p159
      %p161 = scmp.ne.s32.totalorder %s152, %s153
      %p162 = scmp.eq.s32.totalorder %s20, 0
      %p163 = por %p161, %p162
      %p164 = scmp.ne.s32.totalorder %s152, %s153
      %p165 = scmp.eq.s32.totalorder %s21, 7
      %p166 = por %p164, %p165
      %p168 = scmp.ne.s32.totalorder %s153, %s167
      %p169 = scmp.eq.s32.totalorder %s21, 0
      %p170 = por %p168, %p169
      %s171 = ssub.s32 %s22, %s34
      %p172 = scmp.eq.s32.totalorder %s171, 0
      %s174 = sadd.s32 %s173, 1
      %s175 = scalar_select %p172, %s173, %s174
      %p178 = pneg %p172
      %p179 = scmp.eq.s32.totalorder %s15, 7
      %p180 = por %p178, %p179
      %p181 = scmp.ne.s32.totalorder %s173, %s176
      %p182 = scmp.eq.s32.totalorder %s15, 0
      %p183 = por %p181, %p182
      %p184 = scmp.ne.s32.totalorder %s173, %s176
      %p185 = scmp.eq.s32.totalorder %s20, 7
      %p186 = por %p184, %p185
      %p187 = scmp.ne.s32.totalorder %s176, %s177
      %p188 = scmp.eq.s32.totalorder %s20, 0
      %p189 = por %p187, %p188
      %p190 = scmp.ne.s32.totalorder %s176, %s177
      %p191 = scmp.eq.s32.totalorder %s21, 7
      %p192 = por %p190, %p191
      %p194 = scmp.ne.s32.totalorder %s177, %s193
      %p195 = scmp.eq.s32.totalorder %s21, 0
      %p196 = por %p194, %p195
      %p197 = scmp.le.s32.totalorder 1, %s15
      %p198 = scmp.lt.s32.totalorder %s15, 9
      %p199 = pnand %p197, %p198
      %p200 = pneg %p199
      // Predicated region
      $region9: #{tpu_custom_call.1} parent=5 // pred_check
        _
      $region10: #{tpu_custom_call.1} parent=5 // pred_check_branch
        %202 = sbr.rel (%p199) target = $region12
      $region11: #{tpu_custom_call.1} parent=5 // pred_region
        %s203 = ssub.s32 %s15, 1
        // Predicated region
        $region13: #{tpu_custom_call.1} parent=11 // pred_check
          %p204 = pneg %p100
        $region14: #{tpu_custom_call.1} parent=11 // pred_check_branch
          %206 = sbr.rel (%p204) target = $region16
        $region15: #{tpu_custom_call.1} parent=11 // pred_region
          _
        $region16: #{tpu_custom_call.1} parent=11 // pred_fallthru
          _
        // Predicated region
        $region17: #{tpu_custom_call.1} parent=11 // pred_check
          %p207 = pneg %p121
        $region18: #{tpu_custom_call.1} parent=11 // pred_check_branch
          %209 = sbr.rel (%p207) target = $region20
        $region19: #{tpu_custom_call.1} parent=11 // pred_region
          _
        $region20: #{tpu_custom_call.1} parent=11 // pred_fallthru
          _
        // Predicated region
        $region21: #{tpu_custom_call.1} parent=11 // pred_check
          %p210 = pneg %p142
        $region22: #{tpu_custom_call.1} parent=11 // pred_check_branch
          %212 = sbr.rel (%p210) target = $region24
        $region23: #{tpu_custom_call.1} parent=11 // pred_region
          _
        $region24: #{tpu_custom_call.1} parent=11 // pred_fallthru
          _
        // Predicated region
        $region25: #{tpu_custom_call.1} parent=11 // pred_check
          %p213 = pneg %p163
        $region26: #{tpu_custom_call.1} parent=11 // pred_check_branch
          %215 = sbr.rel (%p213) target = $region28
        $region27: #{tpu_custom_call.1} parent=11 // pred_region
          _
        $region28: #{tpu_custom_call.1} parent=11 // pred_fallthru
          _
      $region12: #{tpu_custom_call.1} parent=5 // pred_fallthru
        _
      %p216 = scmp.lt.s32.totalorder %s15, 8
      // Predicated region
      $region29: #{tpu_custom_call.1} parent=5 // pred_check
        %p217 = pneg %p216
      $region30: #{tpu_custom_call.1} parent=5 // pred_check_branch
        %219 = sbr.rel (%p217) target = $region32
      $region31: #{tpu_custom_call.1} parent=5 // pred_region
        // Predicated region
        $region33: #{tpu_custom_call.1} parent=31 // pred_check
          %p220 = pneg %p47
        $region34: #{tpu_custom_call.1} parent=31 // pred_check_branch
          %222 = sbr.rel (%p220) target = $region36
        $region35: #{tpu_custom_call.1} parent=31 // pred_region
          %p223 = scmp.lt.s32.totalorder %s22, 1
          %s224 = scalar_select %p223, %s22, 1
          %s225 = smul.addr %s224, 64
          %s226 = smul.addr %s225, 4
          %s227 = scalar_lea.vmem %s0, %s226
        $region36: #{tpu_custom_call.1} parent=31 // pred_fallthru
          _
        // Predicated region
        $region37: #{tpu_custom_call.1} parent=31 // pred_check
          %p228 = pneg %p73
        $region38: #{tpu_custom_call.1} parent=31 // pred_check_branch
          %230 = sbr.rel (%p228) target = $region40
        $region39: #{tpu_custom_call.1} parent=31 // pred_region
          %p231 = scmp.lt.s32.totalorder %s22, 1
          %s232 = scalar_select %p231, %s22, 1
          %s233 = smul.addr %s232, 2
          %s234 = smul.addr %s233, 4
          %s235 = scalar_lea.vmem %s1, %s234
        $region40: #{tpu_custom_call.1} parent=31 // pred_fallthru
          _
      $region32: #{tpu_custom_call.1} parent=5 // pred_fallthru
        _
      %p236 = scmp.le.s32.totalorder 1, %s15
      %p237 = scmp.lt.s32.totalorder %s15, 9
      %p238 = pnand %p236, %p237
      %p239 = pneg %p238
      // Predicated region
      $region41: #{tpu_custom_call.1} parent=5 // pred_check
        _
      $region42: #{tpu_custom_call.1} parent=5 // pred_check_branch
        %241 = sbr.rel (%p238) target = $region44
      $region43: #{tpu_custom_call.1} parent=5 // pred_region
        %s242 = ssub.s32 %s15, 1
        %p243 = scmp.lt.s32.totalorder %s24, 1
        %s244 = scalar_select %p243, %s24, 1
        %s245 = smul.addr %s244, 64
        %s246 = smul.addr %s245, 4
        %s247 = scalar_lea.vmem %s0, %s246
        %p248 = pneg %p53
        %p249 = pneg %p50
        %p250 = scmp.lt.s32.totalorder %s24, 1
        %s251 = scalar_select %p250, %s24, 1
        %s252 = smul.addr %s251, 2
        %s253 = smul.addr %s252, 4
        %s254 = scalar_lea.vmem %s1, %s253
        %p255 = pneg %p79
        %p256 = pneg %p76
        %p257 = pneg %p100
        %p258 = pneg %p97
        %p259 = pneg %p121
        %p260 = pneg %p118
        %p261 = pneg %p142
        %p262 = pneg %p139
        %p263 = pneg %p163
        %p264 = pneg %p160
        %p265 = pneg %p189
        %p266 = pneg %p186
        %s267 = sand.u32 %s176, 1
        %s268 = scalar_lea.sflag [#allocation9], %s267
        %s269 = sand.u32 %s176, 1
        %s270 = smul.addr %s269, 8
        %s271 = scalar_lea.vmem [#allocation8], %s270
        %p272 = scmp.lt.s32.totalorder %s24, 1
        %s273 = scalar_select %p272, %s24, 1
        %s274 = smul.addr %s273, 64
        %s275 = smul.addr %s274, 4
        %s276 = scalar_lea.vmem %s0, %s275
        %p277 = scmp.lt.s32.totalorder %s24, 1
        %s278 = scalar_select %p277, %s24, 1
        %s279 = smul.addr %s278, 2
        %s280 = smul.addr %s279, 4
        %s281 = scalar_lea.vmem %s1, %s280
        %p283 = scmp.eq.s32.totalorder %s25, 0
        // Predicated region
        $region45: #{tpu_custom_call.1} parent=43 // pred_check
          %p284 = pneg %p283
        $region46: #{tpu_custom_call.1} parent=43 // pred_check_branch
          %286 = sbr.rel (%p284) target = $region48
        $region47: #{tpu_custom_call.1} parent=43 // pred_region
          %v287 = vld [vmem:[%s276] sm:$0xff]
          %v288 = vld [vmem:[%s276 + $0x8] sm:$0xff]
          %v289 = vld [vmem:[%s276 + $0x10] sm:$0xff]
          %v290 = vld [vmem:[%s276 + $0x18] sm:$0xff]
          %v291 = vld [vmem:[%s276 + $0x20] sm:$0xff]
          %v292 = vld [vmem:[%s276 + $0x28] sm:$0xff]
          %v293 = vld [vmem:[%s276 + $0x30] sm:$0xff]
          %v294 = vld [vmem:[%s276 + $0x38] sm:$0xff]
          %v295 = vld [vmem:[%s276 + $0x40] sm:$0xff]
          %v296 = vld [vmem:[%s276 + $0x48] sm:$0xff]
          %v297 = vld [vmem:[%s276 + $0x50] sm:$0xff]
          %v298 = vld [vmem:[%s276 + $0x58] sm:$0xff]
          %v299 = vld [vmem:[%s276 + $0x60] sm:$0xff]
          %v300 = vld [vmem:[%s276 + $0x68] sm:$0xff]
          %v301 = vld [vmem:[%s276 + $0x70] sm:$0xff]
          %v302 = vld [vmem:[%s276 + $0x78] sm:$0xff]
          %v303 = vld [vmem:[%s276 + $0x80] sm:$0xff]
          %v304 = vld [vmem:[%s276 + $0x88] sm:$0xff]
          %v305 = vld [vmem:[%s276 + $0x90] sm:$0xff]
          %v306 = vld [vmem:[%s276 + $0x98] sm:$0xff]
          %v307 = vld [vmem:[%s276 + $0xa0] sm:$0xff]
          %v308 = vld [vmem:[%s276 + $0xa8] sm:$0xff]
          %v309 = vld [vmem:[%s276 + $0xb0] sm:$0xff]
          %v310 = vld [vmem:[%s276 + $0xb8] sm:$0xff]
          %v311 = vld [vmem:[%s276 + $0xc0] sm:$0xff]
          %v312 = vld [vmem:[%s276 + $0xc8] sm:$0xff]
          %v313 = vld [vmem:[%s276 + $0xd0] sm:$0xff]
          %v314 = vld [vmem:[%s276 + $0xd8] sm:$0xff]
          %v315 = vld [vmem:[%s276 + $0xe0] sm:$0xff]
          %v316 = vld [vmem:[%s276 + $0xe8] sm:$0xff]
          %v317 = vld [vmem:[%s276 + $0xf0] sm:$0xff]
          %v318 = vld [vmem:[%s276 + $0xf8] sm:$0xff]
          %v319 = vld [vmem:[%s2] sm:$0xf]
          %v320 = vld [vmem:[%s2 + $0x4] sm:$0xf]
          %v321 = vld [vmem:[%s2 + $0x8] sm:$0xf]
          %v322 = vld [vmem:[%s2 + $0xc] sm:$0xf]
          %v323 = vld [vmem:[%s2 + $0x10] sm:$0xf]
          %v324 = vld [vmem:[%s2 + $0x14] sm:$0xf]
          %v325 = vld [vmem:[%s2 + $0x18] sm:$0xf]
          %v326 = vld [vmem:[%s2 + $0x1c] sm:$0xf]
          %v327 = vld [vmem:[%s2 + $0x20] sm:$0xf]
          %v328 = vld [vmem:[%s2 + $0x24] sm:$0xf]
          %v329 = vld [vmem:[%s2 + $0x28] sm:$0xf]
          %v330 = vld [vmem:[%s2 + $0x2c] sm:$0xf]
          %v331 = vld [vmem:[%s2 + $0x30] sm:$0xf]
          %v332 = vld [vmem:[%s2 + $0x34] sm:$0xf]
          %v333 = vld [vmem:[%s2 + $0x38] sm:$0xf]
          %v334 = vld [vmem:[%s2 + $0x3c] sm:$0xf]
          %v335 = vld [vmem:[%s2 + $0x40] sm:$0xf]
          %v336 = vld [vmem:[%s2 + $0x44] sm:$0xf]
          %v337 = vld [vmem:[%s2 + $0x48] sm:$0xf]
          %v338 = vld [vmem:[%s2 + $0x4c] sm:$0xf]
          %v339 = vld [vmem:[%s2 + $0x50] sm:$0xf]
          %v340 = vld [vmem:[%s2 + $0x54] sm:$0xf]
          %v341 = vld [vmem:[%s2 + $0x58] sm:$0xf]
          %v342 = vld [vmem:[%s2 + $0x5c] sm:$0xf]
          %v343 = vld [vmem:[%s2 + $0x60] sm:$0x3]
          %v344 = vld [vmem:[%s3] sm:$0x1]
          %v346 = vlaneseq
          %v347 = vshrl.u32 %v346, 7
          %v348 = vsub.s32 0, %v347
          %v349 = vrot.slane %v344, %v348
          %v383 = vunpack.c.l.b16 %v287
          %v384 = vunpack.c.h.b16 %v287
          %v385 = vunpack.c.l.b16 %v288
          %v386 = vunpack.c.h.b16 %v288
          %v387 = vunpack.c.l.b16 %v289
          %v388 = vunpack.c.h.b16 %v289
          %v389 = vunpack.c.l.b16 %v290
          %v390 = vunpack.c.h.b16 %v290
          %v391 = vunpack.c.l.b16 %v291
          %v392 = vunpack.c.h.b16 %v291
          %v393 = vunpack.c.l.b16 %v292
          %v394 = vunpack.c.h.b16 %v292
          %v395 = vunpack.c.l.b16 %v293
          %v396 = vunpack.c.h.b16 %v293
          %v397 = vunpack.c.l.b16 %v294
          %v398 = vunpack.c.h.b16 %v294
          %v399 = vunpack.c.l.b16 %v295
          %v400 = vunpack.c.h.b16 %v295
          %v401 = vunpack.c.l.b16 %v296
          %v402 = vunpack.c.h.b16 %v296
          %v403 = vunpack.c.l.b16 %v297
          %v404 = vunpack.c.h.b16 %v297
          %v405 = vunpack.c.l.b16 %v298
          %v406 = vunpack.c.h.b16 %v298
          %v407 = vunpack.c.l.b16 %v299
          %v408 = vunpack.c.h.b16 %v299
          %v409 = vunpack.c.l.b16 %v300
          %v410 = vunpack.c.h.b16 %v300
          %v411 = vunpack.c.l.b16 %v301
          %v412 = vunpack.c.h.b16 %v301
          %v413 = vunpack.c.l.b16 %v302
          %v414 = vunpack.c.h.b16 %v302
          %v415 = vunpack.c.l.b16 %v303
          %v416 = vunpack.c.h.b16 %v303
          %v417 = vunpack.c.l.b16 %v304
          %v418 = vunpack.c.h.b16 %v304
          %v419 = vunpack.c.l.b16 %v305
          %v420 = vunpack.c.h.b16 %v305
          %v421 = vunpack.c.l.b16 %v306
          %v422 = vunpack.c.h.b16 %v306
          %v423 = vunpack.c.l.b16 %v307
          %v424 = vunpack.c.h.b16 %v307
          %v425 = vunpack.c.l.b16 %v308
          %v426 = vunpack.c.h.b16 %v308
          %v427 = vunpack.c.l.b16 %v309
          %v428 = vunpack.c.h.b16 %v309
          %v429 = vunpack.c.l.b16 %v310
          %v430 = vunpack.c.h.b16 %v310
          %v431 = vunpack.c.l.b16 %v311
          %v432 = vunpack.c.h.b16 %v311
          %v433 = vunpack.c.l.b16 %v312
          %v434 = vunpack.c.h.b16 %v312
          %v435 = vunpack.c.l.b16 %v313
          %v436 = vunpack.c.h.b16 %v313
          %v437 = vunpack.c.l.b16 %v314
          %v438 = vunpack.c.h.b16 %v314
          %v439 = vunpack.c.l.b16 %v315
          %v440 = vunpack.c.h.b16 %v315
          %v441 = vunpack.c.l.b16 %v316
          %v442 = vunpack.c.h.b16 %v316
          %v443 = vunpack.c.l.b16 %v317
          %v444 = vunpack.c.h.b16 %v317
          %v445 = vunpack.c.l.b16 %v318
          %v446 = vunpack.c.h.b16 %v318
          %v447 = vpack.c.b16 %v385, %v383
          %v448 = vpack.c.b16 %v386, %v384
          %v449 = vpack.c.b16 %v389, %v387
          %v450 = vpack.c.b16 %v390, %v388
          %v451 = vpack.c.b16 %v393, %v391
          %v452 = vpack.c.b16 %v394, %v392
          %v453 = vpack.c.b16 %v397, %v395
          %v454 = vpack.c.b16 %v398, %v396
          %v455 = vpack.c.b16 %v401, %v399
          %v456 = vpack.c.b16 %v402, %v400
          %v457 = vpack.c.b16 %v405, %v403
          %v458 = vpack.c.b16 %v406, %v404
          %v459 = vpack.c.b16 %v409, %v407
          %v460 = vpack.c.b16 %v410, %v408
          %v461 = vpack.c.b16 %v413, %v411
          %v462 = vpack.c.b16 %v414, %v412
          %v463 = vpack.c.b16 %v417, %v415
          %v464 = vpack.c.b16 %v418, %v416
          %v465 = vpack.c.b16 %v421, %v419
          %v466 = vpack.c.b16 %v422, %v420
          %v467 = vpack.c.b16 %v425, %v423
          %v468 = vpack.c.b16 %v426, %v424
          %v469 = vpack.c.b16 %v429, %v427
          %v470 = vpack.c.b16 %v430, %v428
          %v471 = vpack.c.b16 %v433, %v431
          %v472 = vpack.c.b16 %v434, %v432
          %v473 = vpack.c.b16 %v437, %v435
          %v474 = vpack.c.b16 %v438, %v436
          %v475 = vpack.c.b16 %v441, %v439
          %v476 = vpack.c.b16 %v442, %v440
          %v477 = vpack.c.b16 %v445, %v443
          %v478 = vpack.c.b16 %v446, %v444
          %v520 = vunpack.c.l.b16 %v319
          %v521 = vunpack.c.l.b16 %v320
          %v522 = vunpack.c.l.b16 %v321
          %v523 = vunpack.c.l.b16 %v322
          %v524 = vunpack.c.l.b16 %v323
          %v525 = vunpack.c.l.b16 %v324
          %v526 = vunpack.c.l.b16 %v325
          %v527 = vunpack.c.l.b16 %v326
          %v528 = vunpack.c.l.b16 %v327
          %v529 = vunpack.c.l.b16 %v328
          %v530 = vunpack.c.l.b16 %v329
          %v531 = vunpack.c.l.b16 %v330
          %v532 = vunpack.c.l.b16 %v331
          %v533 = vunpack.c.l.b16 %v332
          %v534 = vunpack.c.l.b16 %v333
          %v535 = vunpack.c.l.b16 %v334
          %v536 = vunpack.c.l.b16 %v335
          %v537 = vunpack.c.l.b16 %v336
          %v538 = vunpack.c.l.b16 %v337
          %v539 = vunpack.c.l.b16 %v338
          %v540 = vunpack.c.l.b16 %v339
          %v541 = vunpack.c.l.b16 %v340
          %v542 = vunpack.c.l.b16 %v341
          %v543 = vunpack.c.l.b16 %v342
          %v544 = vunpack.c.l.b16 %v343
          %v545 = vpack.c.b16 %v521, %v520
          %v546 = vpack.c.b16 %v523, %v522
          %v547 = vpack.c.b16 %v525, %v524
          %v548 = vpack.c.b16 %v527, %v526
          %v549 = vpack.c.b16 %v529, %v528
          %v550 = vpack.c.b16 %v531, %v530
          %v551 = vpack.c.b16 %v533, %v532
          %v552 = vpack.c.b16 %v535, %v534
          %v553 = vpack.c.b16 %v537, %v536
          %v554 = vpack.c.b16 %v539, %v538
          %v555 = vpack.c.b16 %v541, %v540
          %v556 = vpack.c.b16 %v543, %v542
          %v557 = vpack.c.b16 %v544, %v544
          %vm570 = vcmask 556032
          %v572 = vsel %vm570, %v448, 0
          %v575 = vsel %vm570, %v450, 0
          %v578 = vsel %vm570, %v452, 0
          %v581 = vsel %vm570, %v454, 0
          %v584 = vsel %vm570, %v456, 0
          %v587 = vsel %vm570, %v458, 0
          %v590 = vsel %vm570, %v460, 0
          %v593 = vsel %vm570, %v462, 0
          %v596 = vsel %vm570, %v464, 0
          %v599 = vsel %vm570, %v466, 0
          %v602 = vsel %vm570, %v468, 0
          %v605 = vsel %vm570, %v470, 0
          %v608 = vsel %vm570, %v472, 0
          %v611 = vsel %vm570, %v474, 0
          %v614 = vsel %vm570, %v476, 0
          %v617 = vsel %vm570, %v478, 0
          %vm619 = vcmask 1041408
          %v621 = vsel %vm619, %v557, 0
          %623 = vmatprep.subr.bf16.mxu0 0
          %624 = vmatpush1.bf16.msra.mxu0 %v545
          %625 = vmatprep.subr.bf16.mxu0 0
          %626 = vmatpush1.bf16.msra.mxu0 %v546
          %627 = vmatprep.subr.bf16.mxu0 0
          %628 = vmatpush1.bf16.msra.mxu0 %v547
          %629 = vmatprep.subr.bf16.mxu0 0
          %630 = vmatpush1.bf16.msra.mxu0 %v548
          %631 = vmatprep.subr.bf16.mxu0 0
          %632 = vmatpush1.bf16.msra.mxu0 %v549
          %633 = vmatprep.subr.bf16.mxu0 0
          %634 = vmatpush1.bf16.msra.mxu0 %v550
          %635 = vmatprep.subr.bf16.mxu0 0
          %636 = vmatpush1.bf16.msra.mxu0 %v551
          %637 = vmatprep.subr.bf16.mxu0 0
          %638 = vmatpush1.bf16.msra.mxu0 %v552
          %639 = vmatprep.subr.bf16.mxu0 0
          %640 = vmatpush1.bf16.msra.mxu0 %v553
          %641 = vmatprep.subr.bf16.mxu0 0
          %642 = vmatpush1.bf16.msra.mxu0 %v554
          %643 = vmatprep.subr.bf16.mxu0 0
          %644 = vmatpush1.bf16.msra.mxu0 %v555
          %645 = vmatprep.subr.bf16.mxu0 0
          %646 = vmatpush1.bf16.msra.mxu0 %v556
          %647 = vmatprep.subr.bf16.mxu0 0
          %648 = vmatpush1.bf16.msra.mxu0 %v621
          %649 = vmatprep.subr.bf16.mxu0 0
          %650 = vmatpush1.bf16.msra.mxu0 0
          %651 = vmatprep.subr.bf16.mxu0 0
          %652 = vmatpush1.bf16.msra.mxu0 0
          %653 = vmatprep.subr.bf16.mxu0 0
          %654 = vmatpush1.bf16.msra.mxu0 0
          %655 = vmatprep.mubr.bf16.mxu0 %v572
          %656 = vmatmul.mubr.bf16.gmra.mrb[0].mxu0 %v447
          %v657 = vpop.f32.mrb[0].mxu0
          %v658 = vadd.f32 %v349, %v657
          %v659 = vpop.f32.mrb[0].mxu0
          %v660 = vpop.f32.mrb[0].mxu0
          %v661 = vadd.f32 %v349, %v660
          %v662 = vpop.f32.mrb[0].mxu0
          %663 = vmatprep.mubr.bf16.mxu0 %v575
          %664 = vmatmul.mubr.bf16.gmra.mrb[0].mxu0 %v449
          %v665 = vpop.f32.mrb[0].mxu0
          %v666 = vadd.f32 %v349, %v665
          %v667 = vpop.f32.mrb[0].mxu0
          %v668 = vpop.f32.mrb[0].mxu0
          %v669 = vadd.f32 %v349, %v668
          %v670 = vpop.f32.mrb[0].mxu0
          %671 = vmatprep.mubr.bf16.mxu0 %v578
          %672 = vmatmul.mubr.bf16.gmra.mrb[0].mxu0 %v451
          %v673 = vpop.f32.mrb[0].mxu0
          %v674 = vadd.f32 %v349, %v673
          %v675 = vpop.f32.mrb[0].mxu0
          %v676 = vpop.f32.mrb[0].mxu0
          %v677 = vadd.f32 %v349, %v676
          %v678 = vpop.f32.mrb[0].mxu0
          %679 = vmatprep.mubr.bf16.mxu0 %v581
          %680 = vmatmul.mubr.bf16.gmra.mrb[0].mxu0 %v453
          %v681 = vpop.f32.mrb[0].mxu0
          %v682 = vadd.f32 %v349, %v681
          %v683 = vpop.f32.mrb[0].mxu0
          %v684 = vpop.f32.mrb[0].mxu0
          %v685 = vadd.f32 %v349, %v684
          %v686 = vpop.f32.mrb[0].mxu0
          %687 = vmatprep.mubr.bf16.mxu0 %v584
          %688 = vmatmul.mubr.bf16.gmra.mrb[0].mxu0 %v455
          %v689 = vpop.f32.mrb[0].mxu0
          %v690 = vadd.f32 %v349, %v689
          %v691 = vpop.f32.mrb[0].mxu0
          %v692 = vpop.f32.mrb[0].mxu0
          %v693 = vadd.f32 %v349, %v692
          %v694 = vpop.f32.mrb[0].mxu0
          %695 = vmatprep.mubr.bf16.mxu0 %v587
          %696 = vmatmul.mubr.bf16.gmra.mrb[0].mxu0 %v457
          %v697 = vpop.f32.mrb[0].mxu0
          %v698 = vadd.f32 %v349, %v697
          %v699 = vpop.f32.mrb[0].mxu0
          %v700 = vpop.f32.mrb[0].mxu0
          %v701 = vadd.f32 %v349, %v700
          %v702 = vpop.f32.mrb[0].mxu0
          %703 = vmatprep.mubr.bf16.mxu0 %v590
          %704 = vmatmul.mubr.bf16.gmra.mrb[0].mxu0 %v459
          %v705 = vpop.f32.mrb[0].mxu0
          %v706 = vadd.f32 %v349, %v705
          %v707 = vpop.f32.mrb[0].mxu0
          %v708 = vpop.f32.mrb[0].mxu0
          %v709 = vadd.f32 %v349, %v708
          %v710 = vpop.f32.mrb[0].mxu0
          %711 = vmatprep.mubr.bf16.mxu0 %v593
          %712 = vmatmul.mubr.bf16.gmra.mrb[0].mxu0 %v461
          %v713 = vpop.f32.mrb[0].mxu0
          %v714 = vadd.f32 %v349, %v713
          %v715 = vpop.f32.mrb[0].mxu0
          %v716 = vpop.f32.mrb[0].mxu0
          %v717 = vadd.f32 %v349, %v716
          %v718 = vpop.f32.mrb[0].mxu0
          %719 = vmatprep.mubr.bf16.mxu0 %v596
          %720 = vmatmul.mubr.bf16.gmra.mrb[0].mxu0 %v463
          %v721 = vpop.f32.mrb[0].mxu0
          %v722 = vadd.f32 %v349, %v721
          %v723 = vpop.f32.mrb[0].mxu0
          %v724 = vpop.f32.mrb[0].mxu0
          %v725 = vadd.f32 %v349, %v724
          %v726 = vpop.f32.mrb[0].mxu0
          %727 = vmatprep.mubr.bf16.mxu0 %v599
          %728 = vmatmul.mubr.bf16.gmra.mrb[0].mxu0 %v465
          %v729 = vpop.f32.mrb[0].mxu0
          %v730 = vadd.f32 %v349, %v729
          %v731 = vpop.f32.mrb[0].mxu0
          %v732 = vpop.f32.mrb[0].mxu0
          %v733 = vadd.f32 %v349, %v732
          %v734 = vpop.f32.mrb[0].mxu0
          %735 = vmatprep.mubr.bf16.mxu0 %v602
          %736 = vmatmul.mubr.bf16.gmra.mrb[0].mxu0 %v467
          %v737 = vpop.f32.mrb[0].mxu0
          %v738 = vadd.f32 %v349, %v737
          %v739 = vpop.f32.mrb[0].mxu0
          %v740 = vpop.f32.mrb[0].mxu0
          %v741 = vadd.f32 %v349, %v740
          %v742 = vpop.f32.mrb[0].mxu0
          %743 = vmatprep.mubr.bf16.mxu0 %v605
          %744 = vmatmul.mubr.bf16.gmra.mrb[0].mxu0 %v469
          %v745 = vpop.f32.mrb[0].mxu0
          %v746 = vadd.f32 %v349, %v745
          %v747 = vpop.f32.mrb[0].mxu0
          %v748 = vpop.f32.mrb[0].mxu0
          %v749 = vadd.f32 %v349, %v748
          %v750 = vpop.f32.mrb[0].mxu0
          %751 = vmatprep.mubr.bf16.mxu0 %v608
          %752 = vmatmul.mubr.bf16.gmra.mrb[0].mxu0 %v471
          %v753 = vpop.f32.mrb[0].mxu0
          %v754 = vadd.f32 %v349, %v753
          %v755 = vpop.f32.mrb[0].mxu0
          %v756 = vpop.f32.mrb[0].mxu0
          %v757 = vadd.f32 %v349, %v756
          %v758 = vpop.f32.mrb[0].mxu0
          %759 = vmatprep.mubr.bf16.mxu0 %v611
          %760 = vmatmul.mubr.bf16.gmra.mrb[0].mxu0 %v473
          %v761 = vpop.f32.mrb[0].mxu0
          %v762 = vadd.f32 %v349, %v761
          %v763 = vpop.f32.mrb[0].mxu0
          %v764 = vpop.f32.mrb[0].mxu0
          %v765 = vadd.f32 %v349, %v764
          %v766 = vpop.f32.mrb[0].mxu0
          %767 = vmatprep.mubr.bf16.mxu0 %v614
          %768 = vmatmul.mubr.bf16.gmra.mrb[0].mxu0 %v475
          %v769 = vpop.f32.mrb[0].mxu0
          %v770 = vadd.f32 %v349, %v769
          %v771 = vpop.f32.mrb[0].mxu0
          %v772 = vpop.f32.mrb[0].mxu0
          %v773 = vadd.f32 %v349, %v772
          %v774 = vpop.f32.mrb[0].mxu0
          %775 = vmatprep.mubr.bf16.mxu0 %v617
          %776 = vmatmul.mubr.bf16.gmra.mrb[0].mxu0 %v477
          %v777 = vpop.f32.mrb[0].mxu0
          %v778 = vadd.f32 %v349, %v777
          %v779 = vpop.f32.mrb[0].mxu0
          %v780 = vpop.f32.mrb[0].mxu0
          %v781 = vadd.f32 %v349, %v780
          %v782 = vpop.f32.mrb[0].mxu0
          %783 = vdwg.mxu0
          %v784 = vpack.c.bf16 %v661, %v658
          %v785 = vpack.c.bf16 %v669, %v666
          %v786 = vpack.c.bf16 %v677, %v674
          %v787 = vpack.c.bf16 %v685, %v682
          %v788 = vpack.c.bf16 %v693, %v690
          %v789 = vpack.c.bf16 %v701, %v698
          %v790 = vpack.c.bf16 %v709, %v706
          %v791 = vpack.c.bf16 %v717, %v714
          %v792 = vpack.c.bf16 %v725, %v722
          %v793 = vpack.c.bf16 %v733, %v730
          %v794 = vpack.c.bf16 %v741, %v738
          %v795 = vpack.c.bf16 %v749, %v746
          %v796 = vpack.c.bf16 %v757, %v754
          %v797 = vpack.c.bf16 %v765, %v762
          %v798 = vpack.c.bf16 %v773, %v770
          %v799 = vpack.c.bf16 %v781, %v778
          %vm800 = vcmask 31744
          %801 = vst.msk [vmem:[#allocation2] sm:$0xff] %vm800, %v784
          %802 = vst.msk [vmem:[#allocation2 + $0x8] sm:$0xff] %vm800, %v785
          %803 = vst.msk [vmem:[#allocation2 + $0x10] sm:$0xff] %vm800, %v786
          %804 = vst.msk [vmem:[#allocation2 + $0x18] sm:$0xff] %vm800, %v787
          %805 = vst.msk [vmem:[#allocation2 + $0x20] sm:$0xff] %vm800, %v788
          %806 = vst.msk [vmem:[#allocation2 + $0x28] sm:$0xff] %vm800, %v789
          %807 = vst.msk [vmem:[#allocation2 + $0x30] sm:$0xff] %vm800, %v790
          %808 = vst.msk [vmem:[#allocation2 + $0x38] sm:$0xff] %vm800, %v791
          %809 = vst.msk [vmem:[#allocation2 + $0x40] sm:$0xff] %vm800, %v792
          %810 = vst.msk [vmem:[#allocation2 + $0x48] sm:$0xff] %vm800, %v793
          %811 = vst.msk [vmem:[#allocation2 + $0x50] sm:$0xff] %vm800, %v794
          %812 = vst.msk [vmem:[#allocation2 + $0x58] sm:$0xff] %vm800, %v795
          %813 = vst.msk [vmem:[#allocation2 + $0x60] sm:$0xff] %vm800, %v796
          %814 = vst.msk [vmem:[#allocation2 + $0x68] sm:$0xff] %vm800, %v797
          %815 = vst.msk [vmem:[#allocation2 + $0x70] sm:$0xff] %vm800, %v798
          %816 = vst.msk [vmem:[#allocation2 + $0x78] sm:$0xff] %vm800, %v799
          %833 = vrot.lane.b32.xlu0 %v784, 124
          %v834 = vpop.permute.xlu0 %833
          %835 = vrot.lane.b32.xlu0 %v785, 124
          %v836 = vpop.permute.xlu0 %835
          %837 = vrot.lane.b32.xlu0 %v786, 124
          %v838 = vpop.permute.xlu0 %837
          %839 = vrot.lane.b32.xlu0 %v787, 124
          %v840 = vpop.permute.xlu0 %839
          %841 = vrot.lane.b32.xlu0 %v788, 124
          %v842 = vpop.permute.xlu0 %841
          %843 = vrot.lane.b32.xlu0 %v789, 124
          %v844 = vpop.permute.xlu0 %843
          %845 = vrot.lane.b32.xlu0 %v790, 124
          %v846 = vpop.permute.xlu0 %845
          %847 = vrot.lane.b32.xlu0 %v791, 124
          %v848 = vpop.permute.xlu0 %847
          %849 = vrot.lane.b32.xlu0 %v792, 124
          %v850 = vpop.permute.xlu0 %849
          %851 = vrot.lane.b32.xlu0 %v793, 124
          %v852 = vpop.permute.xlu0 %851
          %853 = vrot.lane.b32.xlu0 %v794, 124
          %v854 = vpop.permute.xlu0 %853
          %855 = vrot.lane.b32.xlu0 %v795, 124
          %v856 = vpop.permute.xlu0 %855
          %857 = vrot.lane.b32.xlu0 %v796, 124
          %v858 = vpop.permute.xlu0 %857
          %859 = vrot.lane.b32.xlu0 %v797, 124
          %v860 = vpop.permute.xlu0 %859
          %861 = vrot.lane.b32.xlu0 %v798, 124
          %v862 = vpop.permute.xlu0 %861
          %863 = vrot.lane.b32.xlu0 %v799, 124
          %v864 = vpop.permute.xlu0 %863
          %881 = vst.msk [vmem:[#allocation3] sm:$0xff] %vm800, %v834
          %882 = vst.msk [vmem:[#allocation3 + $0x8] sm:$0xff] %vm800, %v836
          %883 = vst.msk [vmem:[#allocation3 + $0x10] sm:$0xff] %vm800, %v838
          %884 = vst.msk [vmem:[#allocation3 + $0x18] sm:$0xff] %vm800, %v840
          %885 = vst.msk [vmem:[#allocation3 + $0x20] sm:$0xff] %vm800, %v842
          %886 = vst.msk [vmem:[#allocation3 + $0x28] sm:$0xff] %vm800, %v844
          %887 = vst.msk [vmem:[#allocation3 + $0x30] sm:$0xff] %vm800, %v846
          %888 = vst.msk [vmem:[#allocation3 + $0x38] sm:$0xff] %vm800, %v848
          %889 = vst.msk [vmem:[#allocation3 + $0x40] sm:$0xff] %vm800, %v850
          %890 = vst.msk [vmem:[#allocation3 + $0x48] sm:$0xff] %vm800, %v852
          %891 = vst.msk [vmem:[#allocation3 + $0x50] sm:$0xff] %vm800, %v854
          %892 = vst.msk [vmem:[#allocation3 + $0x58] sm:$0xff] %vm800, %v856
          %893 = vst.msk [vmem:[#allocation3 + $0x60] sm:$0xff] %vm800, %v858
          %894 = vst.msk [vmem:[#allocation3 + $0x68] sm:$0xff] %vm800, %v860
          %895 = vst.msk [vmem:[#allocation3 + $0x70] sm:$0xff] %vm800, %v862
          %896 = vst.msk [vmem:[#allocation3 + $0x78] sm:$0xff] %vm800, %v864
          %897 = vrot.lane.b32.xlu0 %v784, 120
          %v898 = vpop.permute.xlu0 %897
          %899 = vrot.lane.b32.xlu0 %v785, 120
          %v900 = vpop.permute.xlu0 %899
          %901 = vrot.lane.b32.xlu0 %v786, 120
          %v902 = vpop.permute.xlu0 %901
          %903 = vrot.lane.b32.xlu0 %v787, 120
          %v904 = vpop.permute.xlu0 %903
          %905 = vrot.lane.b32.xlu0 %v788, 120
          %v906 = vpop.permute.xlu0 %905
          %907 = vrot.lane.b32.xlu0 %v789, 120
          %v908 = vpop.permute.xlu0 %907
          %909 = vrot.lane.b32.xlu0 %v790, 120
          %v910 = vpop.permute.xlu0 %909
          %911 = vrot.lane.b32.xlu0 %v791, 120
          %v912 = vpop.permute.xlu0 %911
          %913 = vrot.lane.b32.xlu0 %v792, 120
          %v914 = vpop.permute.xlu0 %913
          %915 = vrot.lane.b32.xlu0 %v793, 120
          %v916 = vpop.permute.xlu0 %915
          %917 = vrot.lane.b32.xlu0 %v794, 120
          %v918 = vpop.permute.xlu0 %917
          %919 = vrot.lane.b32.xlu0 %v795, 120
          %v920 = vpop.permute.xlu0 %919
          %921 = vrot.lane.b32.xlu0 %v796, 120
          %v922 = vpop.permute.xlu0 %921
          %923 = vrot.lane.b32.xlu0 %v797, 120
          %v924 = vpop.permute.xlu0 %923
          %925 = vrot.lane.b32.xlu0 %v798, 120
          %v926 = vpop.permute.xlu0 %925
          %927 = vrot.lane.b32.xlu0 %v799, 120
          %v928 = vpop.permute.xlu0 %927
          %945 = vst.msk [vmem:[#allocation4] sm:$0xff] %vm800, %v898
          %946 = vst.msk [vmem:[#allocation4 + $0x8] sm:$0xff] %vm800, %v900
          %947 = vst.msk [vmem:[#allocation4 + $0x10] sm:$0xff] %vm800, %v902
          %948 = vst.msk [vmem:[#allocation4 + $0x18] sm:$0xff] %vm800, %v904
          %949 = vst.msk [vmem:[#allocation4 + $0x20] sm:$0xff] %vm800, %v906
          %950 = vst.msk [vmem:[#allocation4 + $0x28] sm:$0xff] %vm800, %v908
          %951 = vst.msk [vmem:[#allocation4 + $0x30] sm:$0xff] %vm800, %v910
          %952 = vst.msk [vmem:[#allocation4 + $0x38] sm:$0xff] %vm800, %v912
          %953 = vst.msk [vmem:[#allocation4 + $0x40] sm:$0xff] %vm800, %v914
          %954 = vst.msk [vmem:[#allocation4 + $0x48] sm:$0xff] %vm800, %v916
          %955 = vst.msk [vmem:[#allocation4 + $0x50] sm:$0xff] %vm800, %v918
          %956 = vst.msk [vmem:[#allocation4 + $0x58] sm:$0xff] %vm800, %v920
          %957 = vst.msk [vmem:[#allocation4 + $0x60] sm:$0xff] %vm800, %v922
          %958 = vst.msk [vmem:[#allocation4 + $0x68] sm:$0xff] %vm800, %v924
          %959 = vst.msk [vmem:[#allocation4 + $0x70] sm:$0xff] %vm800, %v926
          %960 = vst.msk [vmem:[#allocation4 + $0x78] sm:$0xff] %vm800, %v928
          %961 = vst.msk [vmem:[#allocation5] sm:$0xff] %vm800, 0.0
          %962 = vst.msk [vmem:[#allocation5 + $0x8] sm:$0xff] %vm800, 0.0
          %963 = vst.msk [vmem:[#allocation5 + $0x10] sm:$0xff] %vm800, 0.0
          %964 = vst.msk [vmem:[#allocation5 + $0x18] sm:$0xff] %vm800, 0.0
          %965 = vst.msk [vmem:[#allocation5 + $0x20] sm:$0xff] %vm800, 0.0
          %966 = vst.msk [vmem:[#allocation5 + $0x28] sm:$0xff] %vm800, 0.0
          %967 = vst.msk [vmem:[#allocation5 + $0x30] sm:$0xff] %vm800, 0.0
          %968 = vst.msk [vmem:[#allocation5 + $0x38] sm:$0xff] %vm800, 0.0
          %969 = vst.msk [vmem:[#allocation5 + $0x40] sm:$0xff] %vm800, 0.0
          %970 = vst.msk [vmem:[#allocation5 + $0x48] sm:$0xff] %vm800, 0.0
          %971 = vst.msk [vmem:[#allocation5 + $0x50] sm:$0xff] %vm800, 0.0
          %972 = vst.msk [vmem:[#allocation5 + $0x58] sm:$0xff] %vm800, 0.0
          %973 = vst.msk [vmem:[#allocation5 + $0x60] sm:$0xff] %vm800, 0.0
          %974 = vst.msk [vmem:[#allocation5 + $0x68] sm:$0xff] %vm800, 0.0
          %975 = vst.msk [vmem:[#allocation5 + $0x70] sm:$0xff] %vm800, 0.0
          %976 = vst.msk [vmem:[#allocation5 + $0x78] sm:$0xff] %vm800, 0.0
          %977 = vst.msk [vmem:[#allocation5 + $0x80] sm:$0xff] %vm800, 0.0
          %978 = vst.msk [vmem:[#allocation5 + $0x88] sm:$0xff] %vm800, 0.0
          %979 = vst.msk [vmem:[#allocation5 + $0x90] sm:$0xff] %vm800, 0.0
          %980 = vst.msk [vmem:[#allocation5 + $0x98] sm:$0xff] %vm800, 0.0
          %981 = vst.msk [vmem:[#allocation5 + $0xa0] sm:$0xff] %vm800, 0.0
          %982 = vst.msk [vmem:[#allocation5 + $0xa8] sm:$0xff] %vm800, 0.0
          %983 = vst.msk [vmem:[#allocation5 + $0xb0] sm:$0xff] %vm800, 0.0
          %984 = vst.msk [vmem:[#allocation5 + $0xb8] sm:$0xff] %vm800, 0.0
          %985 = vst.msk [vmem:[#allocation5 + $0xc0] sm:$0xff] %vm800, 0.0
          %986 = vst.msk [vmem:[#allocation5 + $0xc8] sm:$0xff] %vm800, 0.0
          %987 = vst.msk [vmem:[#allocation5 + $0xd0] sm:$0xff] %vm800, 0.0
          %988 = vst.msk [vmem:[#allocation5 + $0xd8] sm:$0xff] %vm800, 0.0
          %989 = vst.msk [vmem:[#allocation5 + $0xe0] sm:$0xff] %vm800, 0.0
          %990 = vst.msk [vmem:[#allocation5 + $0xe8] sm:$0xff] %vm800, 0.0
          %991 = vst.msk [vmem:[#allocation5 + $0xf0] sm:$0xff] %vm800, 0.0
          %992 = vst.msk [vmem:[#allocation5 + $0xf8] sm:$0xff] %vm800, 0.0
          %vm993 = vcmask 0
          %994 = vst.msk [vmem:[#allocation6] sm:$0x1] %vm993, -inf
          %995 = vst.msk [vmem:[#allocation7] sm:$0x1] %vm993, 0.0
        $region48: #{tpu_custom_call.1} parent=43 // pred_fallthru
          _
        %s996 = smul.u32 %s25, 64
        %s997 = sshra.s32 %s996, 4
        %s998 = sand.u32 %s996, 15
        %s999 = smul.addr %s997, 8
        %s1000 = scalar_lea.vmem [#allocation3], %s999
        %v1001 = vld [vmem:[%s1000] sm:$0xff]
        %v1002 = vld [vmem:[%s1000 + $0x8] sm:$0xff]
        %v1003 = vld [vmem:[%s1000 + $0x10] sm:$0xff]
        %v1004 = vld [vmem:[%s1000 + $0x18] sm:$0xff]
        %s1005 = smul.addr %s997, 8
        %s1006 = scalar_lea.vmem [#allocation4], %s1005
        %v1007 = vld [vmem:[%s1006] sm:$0xff]
        %v1008 = vld [vmem:[%s1006 + $0x8] sm:$0xff]
        %v1009 = vld [vmem:[%s1006 + $0x10] sm:$0xff]
        %v1010 = vld [vmem:[%s1006 + $0x18] sm:$0xff]
        %v1011 = vld [vmem:[#allocation2] sm:$0xff]
        %v1012 = vld [vmem:[#allocation2 + $0x8] sm:$0xff]
        %v1013 = vld [vmem:[#allocation2 + $0x10] sm:$0xff]
        %v1014 = vld [vmem:[#allocation2 + $0x18] sm:$0xff]
        %v1015 = vld [vmem:[#allocation2 + $0x20] sm:$0xff]
        %v1016 = vld [vmem:[#allocation2 + $0x28] sm:$0xff]
        %v1017 = vld [vmem:[#allocation2 + $0x30] sm:$0xff]
        %v1018 = vld [vmem:[#allocation2 + $0x38] sm:$0xff]
        %v1019 = vld [vmem:[#allocation2 + $0x40] sm:$0xff]
        %v1020 = vld [vmem:[#allocation2 + $0x48] sm:$0xff]
        %v1021 = vld [vmem:[#allocation2 + $0x50] sm:$0xff]
        %v1022 = vld [vmem:[#allocation2 + $0x58] sm:$0xff]
        %v1023 = vld [vmem:[#allocation2 + $0x60] sm:$0xff]
        %v1024 = vld [vmem:[#allocation2 + $0x68] sm:$0xff]
        %v1025 = vld [vmem:[#allocation2 + $0x70] sm:$0xff]
        %v1026 = vld [vmem:[#allocation2 + $0x78] sm:$0xff]
        %vm1027 = vcmask 31744
        %v1029 = vsel %vm1027, %v1011, 0
        %v1032 = vsel %vm1027, %v1012, 0
        %v1035 = vsel %vm1027, %v1013, 0
        %v1038 = vsel %vm1027, %v1014, 0
        %v1041 = vsel %vm1027, %v1015, 0
        %v1044 = vsel %vm1027, %v1016, 0
        %v1047 = vsel %vm1027, %v1017, 0
        %v1050 = vsel %vm1027, %v1018, 0
        %v1053 = vsel %vm1027, %v1019, 0
        %v1056 = vsel %vm1027, %v1020, 0
        %v1059 = vsel %vm1027, %v1021, 0
        %v1062 = vsel %vm1027, %v1022, 0
        %v1065 = vsel %vm1027, %v1023, 0
        %v1068 = vsel %vm1027, %v1024, 0
        %v1071 = vsel %vm1027, %v1025, 0
        %v1074 = vsel %vm1027, %v1026, 0
        %v1077 = vsel %vm1027, %v1001, 0
        %v1080 = vsel %vm1027, %v1002, 0
        %v1083 = vsel %vm1027, %v1003, 0
        %v1086 = vsel %vm1027, %v1004, 0
        %1088 = vmatprep.subr.bf16.mxu0 0
        %1089 = vmatpush1.bf16.xpose.msra.mxu0 %v1077
        %1090 = vmatprep.subr.bf16.mxu0 0
        %1091 = vmatpush1.bf16.xpose.msra.mxu0 %v1080
        %1092 = vmatprep.subr.bf16.mxu0 0
        %1093 = vmatpush1.bf16.xpose.msra.mxu0 %v1083
        %1094 = vmatprep.subr.bf16.mxu0 0
        %1095 = vmatpush1.bf16.xpose.msra.mxu0 %v1086
        %1096 = vmatprep.subr.bf16.mxu0 0
        %1097 = vmatpush1.bf16.xpose.msra.mxu0 0
        %1098 = vmatprep.subr.bf16.mxu0 0
        %1099 = vmatpush1.bf16.xpose.msra.mxu0 0
        %1100 = vmatprep.subr.bf16.mxu0 0
        %1101 = vmatpush1.bf16.xpose.msra.mxu0 0
        %1102 = vmatprep.subr.bf16.mxu0 0
        %1103 = vmatpush1.bf16.xpose.msra.mxu0 0
        %1104 = vmatprep.subr.bf16.mxu0 0
        %1105 = vmatpush1.bf16.xpose.msra.mxu0 0
        %1106 = vmatprep.subr.bf16.mxu0 0
        %1107 = vmatpush1.bf16.xpose.msra.mxu0 0
        %1108 = vmatprep.subr.bf16.mxu0 0
        %1109 = vmatpush1.bf16.xpose.msra.mxu0 0
        %1110 = vmatprep.subr.bf16.mxu0 0
        %1111 = vmatpush1.bf16.xpose.msra.mxu0 0
        %1112 = vmatprep.subr.bf16.mxu0 0
        %1113 = vmatpush1.bf16.xpose.msra.mxu0 0
        %1114 = vmatprep.subr.bf16.mxu0 0
        %1115 = vmatpush1.bf16.xpose.msra.mxu0 0
        %1116 = vmatprep.subr.bf16.mxu0 0
        %1117 = vmatpush1.bf16.xpose.msra.mxu0 0
        %1118 = vmatprep.subr.bf16.mxu0 0
        %1119 = vmatpush1.bf16.xpose.msra.mxu0 0
        %1120 = vmatprep.mubr.bf16.mxu0 0
        %1121 = vmatmul.mubr.bf16.gmra.mrb[0].mxu0 %v1029
        %v1122 = vpop.f32.mrb[0].mxu0
        %v1123 = vadd.f32 0.0, %v1122
        %v1124 = vpop.f32.mrb[0].mxu0
        %v1125 = vpop.f32.mrb[0].mxu0
        %v1126 = vadd.f32 0.0, %v1125
        %v1127 = vpop.f32.mrb[0].mxu0
        %1128 = vmatprep.mubr.bf16.mxu0 0
        %1129 = vmatmul.mubr.bf16.gmra.mrb[0].mxu0 %v1032
        %v1130 = vpop.f32.mrb[0].mxu0
        %v1131 = vadd.f32 0.0, %v1130
        %v1132 = vpop.f32.mrb[0].mxu0
        %v1133 = vpop.f32.mrb[0].mxu0
        %v1134 = vadd.f32 0.0, %v1133
        %v1135 = vpop.f32.mrb[0].mxu0
        %1136 = vmatprep.mubr.bf16.mxu0 0
        %1137 = vmatmul.mubr.bf16.gmra.mrb[0].mxu0 %v1035
        %v1138 = vpop.f32.mrb[0].mxu0
        %v1139 = vadd.f32 0.0, %v1138
        %v1140 = vpop.f32.mrb[0].mxu0
        %v1141 = vpop.f32.mrb[0].mxu0
        %v1142 = vadd.f32 0.0, %v1141
        %v1143 = vpop.f32.mrb[0].mxu0
        %1144 = vmatprep.mubr.bf16.mxu0 0
        %1145 = vmatmul.mubr.bf16.gmra.mrb[0].mxu0 %v1038
        %v1146 = vpop.f32.mrb[0].mxu0
        %v1147 = vadd.f32 0.0, %v1146
        %v1148 = vpop.f32.mrb[0].mxu0
        %v1149 = vpop.f32.mrb[0].mxu0
        %v1150 = vadd.f32 0.0, %v1149
        %v1151 = vpop.f32.mrb[0].mxu0
        %1152 = vmatprep.mubr.bf16.mxu0 0
        %1153 = vmatmul.mubr.bf16.gmra.mrb[0].mxu0 %v1041
        %v1154 = vpop.f32.mrb[0].mxu0
        %v1155 = vadd.f32 0.0, %v1154
        %v1156 = vpop.f32.mrb[0].mxu0
        %v1157 = vpop.f32.mrb[0].mxu0
        %v1158 = vadd.f32 0.0, %v1157
        %v1159 = vpop.f32.mrb[0].mxu0
        %1160 = vmatprep.mubr.bf16.mxu0 0
        %1161 = vmatmul.mubr.bf16.gmra.mrb[0].mxu0 %v1044
        %v1162 = vpop.f32.mrb[0].mxu0
        %v1163 = vadd.f32 0.0, %v1162
        %v1164 = vpop.f32.mrb[0].mxu0
        %v1165 = vpop.f32.mrb[0].mxu0
        %v1166 = vadd.f32 0.0, %v1165
        %v1167 = vpop.f32.mrb[0].mxu0
        %1168 = vmatprep.mubr.bf16.mxu0 0
        %1169 = vmatmul.mubr.bf16.gmra.mrb[0].mxu0 %v1047
        %v1170 = vpop.f32.mrb[0].mxu0
        %v1171 = vadd.f32 0.0, %v1170
        %v1172 = vpop.f32.mrb[0].mxu0
        %v1173 = vpop.f32.mrb[0].mxu0
        %v1174 = vadd.f32 0.0, %v1173
        %v1175 = vpop.f32.mrb[0].mxu0
        %1176 = vmatprep.mubr.bf16.mxu0 0
        %1177 = vmatmul.mubr.bf16.gmra.mrb[0].mxu0 %v1050
        %v1178 = vpop.f32.mrb[0].mxu0
        %v1179 = vadd.f32 0.0, %v1178
        %v1180 = vpop.f32.mrb[0].mxu0
        %v1181 = vpop.f32.mrb[0].mxu0
        %v1182 = vadd.f32 0.0, %v1181
        %v1183 = vpop.f32.mrb[0].mxu0
        %1184 = vmatprep.mubr.bf16.mxu0 0
        %1185 = vmatmul.mubr.bf16.gmra.mrb[0].mxu0 %v1053
        %v1186 = vpop.f32.mrb[0].mxu0
        %v1187 = vadd.f32 0.0, %v1186
        %v1188 = vpop.f32.mrb[0].mxu0
        %v1189 = vpop.f32.mrb[0].mxu0
        %v1190 = vadd.f32 0.0, %v1189
        %v1191 = vpop.f32.mrb[0].mxu0
        %1192 = vmatprep.mubr.bf16.mxu0 0
        %1193 = vmatmul.mubr.bf16.gmra.mrb[0].mxu0 %v1056
        %v1194 = vpop.f32.mrb[0].mxu0
        %v1195 = vadd.f32 0.0, %v1194
        %v1196 = vpop.f32.mrb[0].mxu0
        %v1197 = vpop.f32.mrb[0].mxu0
        %v1198 = vadd.f32 0.0, %v1197
        %v1199 = vpop.f32.mrb[0].mxu0
        %1200 = vmatprep.mubr.bf16.mxu0 0
        %1201 = vmatmul.mubr.bf16.gmra.mrb[0].mxu0 %v1059
        %v1202 = vpop.f32.mrb[0].mxu0
        %v1203 = vadd.f32 0.0, %v1202
        %v1204 = vpop.f32.mrb[0].mxu0
        %v1205 = vpop.f32.mrb[0].mxu0
        %v1206 = vadd.f32 0.0, %v1205
        %v1207 = vpop.f32.mrb[0].mxu0
        %1208 = vmatprep.mubr.bf16.mxu0 0
        %1209 = vmatmul.mubr.bf16.gmra.mrb[0].mxu0 %v1062
        %v1210 = vpop.f32.mrb[0].mxu0
        %v1211 = vadd.f32 0.0, %v1210
        %v1212 = vpop.f32.mrb[0].mxu0
        %v1213 = vpop.f32.mrb[0].mxu0
        %v1214 = vadd.f32 0.0, %v1213
        %v1215 = vpop.f32.mrb[0].mxu0
        %1216 = vmatprep.mubr.bf16.mxu0 0
        %1217 = vmatmul.mubr.bf16.gmra.mrb[0].mxu0 %v1065
        %v1218 = vpop.f32.mrb[0].mxu0
        %v1219 = vadd.f32 0.0, %v1218
        %v1220 = vpop.f32.mrb[0].mxu0
        %v1221 = vpop.f32.mrb[0].mxu0
        %v1222 = vadd.f32 0.0, %v1221
        %v1223 = vpop.f32.mrb[0].mxu0
        %1224 = vmatprep.mubr.bf16.mxu0 0
        %1225 = vmatmul.mubr.bf16.gmra.mrb[0].mxu0 %v1068
        %v1226 = vpop.f32.mrb[0].mxu0
        %v1227 = vadd.f32 0.0, %v1226
        %v1228 = vpop.f32.mrb[0].mxu0
        %v1229 = vpop.f32.mrb[0].mxu0
        %v1230 = vadd.f32 0.0, %v1229
        %v1231 = vpop.f32.mrb[0].mxu0
        %1232 = vmatprep.mubr.bf16.mxu0 0
        %1233 = vmatmul.mubr.bf16.gmra.mrb[0].mxu0 %v1071
        %v1234 = vpop.f32.mrb[0].mxu0
        %v1235 = vadd.f32 0.0, %v1234
        %v1236 = vpop.f32.mrb[0].mxu0
        %v1237 = vpop.f32.mrb[0].mxu0
        %v1238 = vadd.f32 0.0, %v1237
        %v1239 = vpop.f32.mrb[0].mxu0
        %1240 = vmatprep.mubr.bf16.mxu0 0
        %1241 = vmatmul.mubr.bf16.gmra.mrb[0].mxu0 %v1074
        %v1242 = vpop.f32.mrb[0].mxu0
        %v1243 = vadd.f32 0.0, %v1242
        %v1244 = vpop.f32.mrb[0].mxu0
        %v1245 = vpop.f32.mrb[0].mxu0
        %v1246 = vadd.f32 0.0, %v1245
        %v1247 = vpop.f32.mrb[0].mxu0
        %1248 = vdwg.mxu0
        %v1249 = vld [vmem:[#allocation6] sm:$0x1]
        %vm1250 = vcmask 523264
        %v1251 = vsel %vm1250, %v1123, -inf
        %v1252 = vsel %vm1250, %v1126, -inf
        %v1253 = vsel %vm1250, %v1131, -inf
        %v1254 = vsel %vm1250, %v1134, -inf
        %v1255 = vsel %vm1250, %v1139, -inf
        %v1256 = vmax.f32 %v1251, %v1255
        %v1257 = vsel %vm1250, %v1142, -inf
        %v1258 = vmax.f32 %v1252, %v1257
        %v1259 = vsel %vm1250, %v1147, -inf
        %v1260 = vmax.f32 %v1253, %v1259
        %v1261 = vsel %vm1250, %v1150, -inf
        %v1262 = vmax.f32 %v1254, %v1261
        %v1263 = vsel %vm1250, %v1155, -inf
        %v1264 = vmax.f32 %v1256, %v1263
        %v1265 = vsel %vm1250, %v1158, -inf
        %v1266 = vmax.f32 %v1258, %v1265
        %v1267 = vsel %vm1250, %v1163, -inf
        %v1268 = vmax.f32 %v1260, %v1267
        %v1269 = vsel %vm1250, %v1166, -inf
        %v1270 = vmax.f32 %v1262, %v1269
        %v1271 = vsel %vm1250, %v1171, -inf
        %v1272 = vmax.f32 %v1264, %v1271
        %v1273 = vsel %vm1250, %v1174, -inf
        %v1274 = vmax.f32 %v1266, %v1273
        %v1275 = vsel %vm1250, %v1179, -inf
        %v1276 = vmax.f32 %v1268, %v1275
        %v1277 = vsel %vm1250, %v1182, -inf
        %v1278 = vmax.f32 %v1270, %v1277
        %v1279 = vsel %vm1250, %v1187, -inf
        %v1280 = vmax.f32 %v1272, %v1279
        %v1281 = vsel %vm1250, %v1190, -inf
        %v1282 = vmax.f32 %v1274, %v1281
        %v1283 = vsel %vm1250, %v1195, -inf
        %v1284 = vmax.f32 %v1276, %v1283
        %v1285 = vsel %vm1250, %v1198, -inf
        %v1286 = vmax.f32 %v1278, %v1285
        %v1287 = vsel %vm1250, %v1203, -inf
        %v1288 = vmax.f32 %v1280, %v1287
        %v1289 = vsel %vm1250, %v1206, -inf
        %v1290 = vmax.f32 %v1282, %v1289
        %v1291 = vsel %vm1250, %v1211, -inf
        %v1292 = vmax.f32 %v1284, %v1291
        %v1293 = vsel %vm1250, %v1214, -inf
        %v1294 = vmax.f32 %v1286, %v1293
        %v1295 = vsel %vm1250, %v1219, -inf
        %v1296 = vmax.f32 %v1288, %v1295
        %v1297 = vsel %vm1250, %v1222, -inf
        %v1298 = vmax.f32 %v1290, %v1297
        %v1299 = vsel %vm1250, %v1227, -inf
        %v1300 = vmax.f32 %v1292, %v1299
        %v1301 = vsel %vm1250, %v1230, -inf
        %v1302 = vmax.f32 %v1294, %v1301
        %v1303 = vsel %vm1250, %v1235, -inf
        %v1304 = vmax.f32 %v1296, %v1303
        %v1305 = vsel %vm1250, %v1238, -inf
        %v1306 = vmax.f32 %v1298, %v1305
        %v1307 = vsel %vm1250, %v1243, -inf
        %v1308 = vmax.f32 %v1300, %v1307
        %v1309 = vsel %vm1250, %v1246, -inf
        %v1310 = vmax.f32 %v1302, %v1309
        %v1311 = vmax.f32 %v1304, %v1306
        %v1312 = vmax.f32 %v1308, %v1310
        %v1313 = vmax.f32 %v1311, %v1312
        %1314 = vmax.xlane.f32.xlu0 %v1313
        %v1315 = vpop.xlane.xlu0 %1314
        %v1316 = vrot.slane %v1315, 4
        %v1317 = vmax.f32 %v1315, %v1316
        %v1318 = vrot.slane %v1317, 2
        %v1319 = vmax.f32 %v1317, %v1318
        %v1320 = vrot.slane %v1319, 1
        %v1321 = vmax.f32 %v1319, %v1320
        %s1322 = vtos %v1321
        %v1323 = vstv %s1322
        %v1324 = vmax.f32 %v1249, %v1323
        %v1325 = vsub.f32 %v1249, %v1324
        %v1326 = vmul.f32 %v1325, 1.442695
        %v1327 = vpow.pop %v1326
        %v1329 = vlaneseq
        %v1330 = vshrl.u32 %v1329, 7
        %v1331 = vsub.s32 0, %v1330
        %v1332 = vrot.slane %v1324, %v1331
        %1333 = vset.pattern.permute.xlu0 0
        %1334 = vperm.xlu0 %1333, %v1332
        %v1335 = vpop.permute.xlu0 %1334
        %v1337 = vsub.f32 %v1123, %v1335
        %v1338 = vsub.f32 %v1126, %v1335
        %v1339 = vsub.f32 %v1131, %v1335
        %v1340 = vsub.f32 %v1134, %v1335
        %v1341 = vsub.f32 %v1139, %v1335
        %v1342 = vsub.f32 %v1142, %v1335
        %v1343 = vsub.f32 %v1147, %v1335
        %v1344 = vsub.f32 %v1150, %v1335
        %v1345 = vsub.f32 %v1155, %v1335
        %v1346 = vsub.f32 %v1158, %v1335
        %v1347 = vsub.f32 %v1163, %v1335
        %v1348 = vsub.f32 %v1166, %v1335
        %v1349 = vsub.f32 %v1171, %v1335
        %v1350 = vsub.f32 %v1174, %v1335
        %v1351 = vsub.f32 %v1179, %v1335
        %v1352 = vsub.f32 %v1182, %v1335
        %v1353 = vsub.f32 %v1187, %v1335
        %v1354 = vsub.f32 %v1190, %v1335
        %v1355 = vsub.f32 %v1195, %v1335
        %v1356 = vsub.f32 %v1198, %v1335
        %v1357 = vsub.f32 %v1203, %v1335
        %v1358 = vsub.f32 %v1206, %v1335
        %v1359 = vsub.f32 %v1211, %v1335
        %v1360 = vsub.f32 %v1214, %v1335
        %v1361 = vsub.f32 %v1219, %v1335
        %v1362 = vsub.f32 %v1222, %v1335
        %v1363 = vsub.f32 %v1227, %v1335
        %v1364 = vsub.f32 %v1230, %v1335
        %v1365 = vsub.f32 %v1235, %v1335
        %v1366 = vsub.f32 %v1238, %v1335
        %v1367 = vsub.f32 %v1243, %v1335
        %v1368 = vsub.f32 %v1246, %v1335
        %v1369 = vmul.f32 %v1337, 1.442695
        %v1370 = vpow.pop %v1369
        %v1371 = vmul.f32 %v1338, 1.442695
        %v1372 = vpow.pop %v1371
        %v1373 = vmul.f32 %v1339, 1.442695
        %v1374 = vpow.pop %v1373
        %v1375 = vmul.f32 %v1340, 1.442695
        %v1376 = vpow.pop %v1375
        %v1377 = vmul.f32 %v1341, 1.442695
        %v1378 = vpow.pop %v1377
        %v1379 = vmul.f32 %v1342, 1.442695
        %v1380 = vpow.pop %v1379
        %v1381 = vmul.f32 %v1343, 1.442695
        %v1382 = vpow.pop %v1381
        %v1383 = vmul.f32 %v1344, 1.442695
        %v1384 = vpow.pop %v1383
        %v1385 = vmul.f32 %v1345, 1.442695
        %v1386 = vpow.pop %v1385
        %v1387 = vmul.f32 %v1346, 1.442695
        %v1388 = vpow.pop %v1387
        %v1389 = vmul.f32 %v1347, 1.442695
        %v1390 = vpow.pop %v1389
        %v1391 = vmul.f32 %v1348, 1.442695
        %v1392 = vpow.pop %v1391
        %v1393 = vmul.f32 %v1349, 1.442695
        %v1394 = vpow.pop %v1393
        %v1395 = vmul.f32 %v1350, 1.442695
        %v1396 = vpow.pop %v1395
        %v1397 = vmul.f32 %v1351, 1.442695
        %v1398 = vpow.pop %v1397
        %v1399 = vmul.f32 %v1352, 1.442695
        %v1400 = vpow.pop %v1399
        %v1401 = vmul.f32 %v1353, 1.442695
        %v1402 = vpow.pop %v1401
        %v1403 = vmul.f32 %v1354, 1.442695
        %v1404 = vpow.pop %v1403
        %v1405 = vmul.f32 %v1355, 1.442695
        %v1406 = vpow.pop %v1405
        %v1407 = vmul.f32 %v1356, 1.442695
        %v1408 = vpow.pop %v1407
        %v1409 = vmul.f32 %v1357, 1.442695
        %v1410 = vpow.pop %v1409
        %v1411 = vmul.f32 %v1358, 1.442695
        %v1412 = vpow.pop %v1411
        %v1413 = vmul.f32 %v1359, 1.442695
        %v1414 = vpow.pop %v1413
        %v1415 = vmul.f32 %v1360, 1.442695
        %v1416 = vpow.pop %v1415
        %v1417 = vmul.f32 %v1361, 1.442695
        %v1418 = vpow.pop %v1417
        %v1419 = vmul.f32 %v1362, 1.442695
        %v1420 = vpow.pop %v1419
        %v1421 = vmul.f32 %v1363, 1.442695
        %v1422 = vpow.pop %v1421
        %v1423 = vmul.f32 %v1364, 1.442695
        %v1424 = vpow.pop %v1423
        %v1425 = vmul.f32 %v1365, 1.442695
        %v1426 = vpow.pop %v1425
        %v1427 = vmul.f32 %v1366, 1.442695
        %v1428 = vpow.pop %v1427
        %v1429 = vmul.f32 %v1367, 1.442695
        %v1430 = vpow.pop %v1429
        %v1431 = vmul.f32 %v1368, 1.442695
        %v1432 = vpow.pop %v1431
        %v1433 = vld [vmem:[#allocation7] sm:$0x1]
        %v1434 = vmul.f32 %v1433, %v1327
        %v1435 = vsel %vm1250, %v1370, 0.0
        %v1436 = vsel %vm1250, %v1372, 0.0
        %v1437 = vadd.f32 %v1435, %v1436
        %v1438 = vsel %vm1250, %v1374, 0.0
        %v1439 = vadd.f32 %v1437, %v1438
        %v1440 = vsel %vm1250, %v1376, 0.0
        %v1441 = vadd.f32 %v1439, %v1440
        %v1442 = vsel %vm1250, %v1378, 0.0
        %v1443 = vadd.f32 %v1441, %v1442
        %v1444 = vsel %vm1250, %v1380, 0.0
        %v1445 = vadd.f32 %v1443, %v1444
        %v1446 = vsel %vm1250, %v1382, 0.0
        %v1447 = vadd.f32 %v1445, %v1446
        %v1448 = vsel %vm1250, %v1384, 0.0
        %v1449 = vadd.f32 %v1447, %v1448
        %v1450 = vsel %vm1250, %v1386, 0.0
        %v1451 = vadd.f32 %v1449, %v1450
        %v1452 = vsel %vm1250, %v1388, 0.0
        %v1453 = vadd.f32 %v1451, %v1452
        %v1454 = vsel %vm1250, %v1390, 0.0
        %v1455 = vadd.f32 %v1453, %v1454
        %v1456 = vsel %vm1250, %v1392, 0.0
        %v1457 = vadd.f32 %v1455, %v1456
        %v1458 = vsel %vm1250, %v1394, 0.0
        %v1459 = vadd.f32 %v1457, %v1458
        %v1460 = vsel %vm1250, %v1396, 0.0
        %v1461 = vadd.f32 %v1459, %v1460
        %v1462 = vsel %vm1250, %v1398, 0.0
        %v1463 = vadd.f32 %v1461, %v1462
        %v1464 = vsel %vm1250, %v1400, 0.0
        %v1465 = vadd.f32 %v1463, %v1464
        %v1466 = vsel %vm1250, %v1402, 0.0
        %v1467 = vadd.f32 %v1465, %v1466
        %v1468 = vsel %vm1250, %v1404, 0.0
        %v1469 = vadd.f32 %v1467, %v1468
        %v1470 = vsel %vm1250, %v1406, 0.0
        %v1471 = vadd.f32 %v1469, %v1470
        %v1472 = vsel %vm1250, %v1408, 0.0
        %v1473 = vadd.f32 %v1471, %v1472
        %v1474 = vsel %vm1250, %v1410, 0.0
        %v1475 = vadd.f32 %v1473, %v1474
        %v1476 = vsel %vm1250, %v1412, 0.0
        %v1477 = vadd.f32 %v1475, %v1476
        %v1478 = vsel %vm1250, %v1414, 0.0
        %v1479 = vadd.f32 %v1477, %v1478
        %v1480 = vsel %vm1250, %v1416, 0.0
        %v1481 = vadd.f32 %v1479, %v1480
        %v1482 = vsel %vm1250, %v1418, 0.0
        %v1483 = vadd.f32 %v1481, %v1482
        %v1484 = vsel %vm1250, %v1420, 0.0
        %v1485 = vadd.f32 %v1483, %v1484
        %v1486 = vsel %vm1250, %v1422, 0.0
        %v1487 = vadd.f32 %v1485, %v1486
        %v1488 = vsel %vm1250, %v1424, 0.0
        %v1489 = vadd.f32 %v1487, %v1488
        %v1490 = vsel %vm1250, %v1426, 0.0
        %v1491 = vadd.f32 %v1489, %v1490
        %v1492 = vsel %vm1250, %v1428, 0.0
        %v1493 = vadd.f32 %v1491, %v1492
        %v1494 = vsel %vm1250, %v1430, 0.0
        %v1495 = vadd.f32 %v1493, %v1494
        %v1496 = vsel %vm1250, %v1432, 0.0
        %v1497 = vadd.f32 %v1495, %v1496
        %1498 = vadd.xlane.f32.xlu0 %v1497
        %v1499 = vpop.xlane.xlu0 %1498
        %v1500 = vrot.slane %v1499, 4
        %v1501 = vadd.f32 %v1499, %v1500
        %v1502 = vrot.slane %v1501, 2
        %v1503 = vadd.f32 %v1501, %v1502
        %v1504 = vrot.slane %v1503, 1
        %v1505 = vadd.f32 %v1503, %v1504
        %s1506 = vtos %v1505
        %v1507 = vstv %s1506
        %v1508 = vadd.f32 %v1434, %v1507
        %vm1509 = vcmask 0
        %1510 = vst.msk [vmem:[#allocation7] sm:$0x1] %vm1509, %v1508
        %v1511 = vld [vmem:[#allocation5] sm:$0xff]
        %v1512 = vld [vmem:[#allocation5 + $0x8] sm:$0xff]
        %v1513 = vld [vmem:[#allocation5 + $0x10] sm:$0xff]
        %v1514 = vld [vmem:[#allocation5 + $0x18] sm:$0xff]
        %v1515 = vld [vmem:[#allocation5 + $0x20] sm:$0xff]
        %v1516 = vld [vmem:[#allocation5 + $0x28] sm:$0xff]
        %v1517 = vld [vmem:[#allocation5 + $0x30] sm:$0xff]
        %v1518 = vld [vmem:[#allocation5 + $0x38] sm:$0xff]
        %v1519 = vld [vmem:[#allocation5 + $0x40] sm:$0xff]
        %v1520 = vld [vmem:[#allocation5 + $0x48] sm:$0xff]
        %v1521 = vld [vmem:[#allocation5 + $0x50] sm:$0xff]
        %v1522 = vld [vmem:[#allocation5 + $0x58] sm:$0xff]
        %v1523 = vld [vmem:[#allocation5 + $0x60] sm:$0xff]
        %v1524 = vld [vmem:[#allocation5 + $0x68] sm:$0xff]
        %v1525 = vld [vmem:[#allocation5 + $0x70] sm:$0xff]
        %v1526 = vld [vmem:[#allocation5 + $0x78] sm:$0xff]
        %v1527 = vld [vmem:[#allocation5 + $0x80] sm:$0xff]
        %v1528 = vld [vmem:[#allocation5 + $0x88] sm:$0xff]
        %v1529 = vld [vmem:[#allocation5 + $0x90] sm:$0xff]
        %v1530 = vld [vmem:[#allocation5 + $0x98] sm:$0xff]
        %v1531 = vld [vmem:[#allocation5 + $0xa0] sm:$0xff]
        %v1532 = vld [vmem:[#allocation5 + $0xa8] sm:$0xff]
        %v1533 = vld [vmem:[#allocation5 + $0xb0] sm:$0xff]
        %v1534 = vld [vmem:[#allocation5 + $0xb8] sm:$0xff]
        %v1535 = vld [vmem:[#allocation5 + $0xc0] sm:$0xff]
        %v1536 = vld [vmem:[#allocation5 + $0xc8] sm:$0xff]
        %v1537 = vld [vmem:[#allocation5 + $0xd0] sm:$0xff]
        %v1538 = vld [vmem:[#allocation5 + $0xd8] sm:$0xff]
        %v1539 = vld [vmem:[#allocation5 + $0xe0] sm:$0xff]
        %v1540 = vld [vmem:[#allocation5 + $0xe8] sm:$0xff]
        %v1541 = vld [vmem:[#allocation5 + $0xf0] sm:$0xff]
        %v1542 = vld [vmem:[#allocation5 + $0xf8] sm:$0xff]
        %v1544 = vlaneseq
        %v1545 = vshrl.u32 %v1544, 7
        %v1546 = vsub.s32 0, %v1545
        %v1547 = vrot.slane %v1327, %v1546
        %1548 = vset.pattern.permute.xlu0 0
        %1549 = vperm.xlu0 %1548, %v1547
        %v1550 = vpop.permute.xlu0 %1549
        %v1552 = vmul.f32 %v1511, %v1550
        %v1553 = vmul.f32 %v1512, %v1550
        %v1554 = vmul.f32 %v1513, %v1550
        %v1555 = vmul.f32 %v1514, %v1550
        %v1556 = vmul.f32 %v1515, %v1550
        %v1557 = vmul.f32 %v1516, %v1550
        %v1558 = vmul.f32 %v1517, %v1550
        %v1559 = vmul.f32 %v1518, %v1550
        %v1560 = vmul.f32 %v1519, %v1550
        %v1561 = vmul.f32 %v1520, %v1550
        %v1562 = vmul.f32 %v1521, %v1550
        %v1563 = vmul.f32 %v1522, %v1550
        %v1564 = vmul.f32 %v1523, %v1550
        %v1565 = vmul.f32 %v1524, %v1550
        %v1566 = vmul.f32 %v1525, %v1550
        %v1567 = vmul.f32 %v1526, %v1550
        %v1568 = vmul.f32 %v1527, %v1550
        %v1569 = vmul.f32 %v1528, %v1550
        %v1570 = vmul.f32 %v1529, %v1550
        %v1571 = vmul.f32 %v1530, %v1550
        %v1572 = vmul.f32 %v1531, %v1550
        %v1573 = vmul.f32 %v1532, %v1550
        %v1574 = vmul.f32 %v1533, %v1550
        %v1575 = vmul.f32 %v1534, %v1550
        %v1576 = vmul.f32 %v1535, %v1550
        %v1577 = vmul.f32 %v1536, %v1550
        %v1578 = vmul.f32 %v1537, %v1550
        %v1579 = vmul.f32 %v1538, %v1550
        %v1580 = vmul.f32 %v1539, %v1550
        %v1581 = vmul.f32 %v1540, %v1550
        %v1582 = vmul.f32 %v1541, %v1550
        %v1583 = vmul.f32 %v1542, %v1550
        %v1584 = vpack.c.bf16 %v1372, %v1370
        %v1585 = vpack.c.bf16 %v1376, %v1374
        %v1586 = vpack.c.bf16 %v1380, %v1378
        %v1587 = vpack.c.bf16 %v1384, %v1382
        %v1588 = vpack.c.bf16 %v1388, %v1386
        %v1589 = vpack.c.bf16 %v1392, %v1390
        %v1590 = vpack.c.bf16 %v1396, %v1394
        %v1591 = vpack.c.bf16 %v1400, %v1398
        %v1592 = vpack.c.bf16 %v1404, %v1402
        %v1593 = vpack.c.bf16 %v1408, %v1406
        %v1594 = vpack.c.bf16 %v1412, %v1410
        %v1595 = vpack.c.bf16 %v1416, %v1414
        %v1596 = vpack.c.bf16 %v1420, %v1418
        %v1597 = vpack.c.bf16 %v1424, %v1422
        %v1598 = vpack.c.bf16 %v1428, %v1426
        %v1599 = vpack.c.bf16 %v1432, %v1430
        %v1601 = vsel %vm1250, %v1584, 0
        %v1604 = vsel %vm1250, %v1585, 0
        %v1607 = vsel %vm1250, %v1586, 0
        %v1610 = vsel %vm1250, %v1587, 0
        %v1613 = vsel %vm1250, %v1588, 0
        %v1616 = vsel %vm1250, %v1589, 0
        %v1619 = vsel %vm1250, %v1590, 0
        %v1622 = vsel %vm1250, %v1591, 0
        %v1625 = vsel %vm1250, %v1592, 0
        %v1628 = vsel %vm1250, %v1593, 0
        %v1631 = vsel %vm1250, %v1594, 0
        %v1634 = vsel %vm1250, %v1595, 0
        %v1637 = vsel %vm1250, %v1596, 0
        %v1640 = vsel %vm1250, %v1597, 0
        %v1643 = vsel %vm1250, %v1598, 0
        %v1646 = vsel %vm1250, %v1599, 0
        %1648 = vmatprep.subr.bf16.mxu0 0
        %1649 = vmatpush1.bf16.msra.mxu0 %v1007
        %1650 = vmatprep.subr.bf16.mxu0 0
        %1651 = vmatpush1.bf16.msra.mxu0 %v1008
        %1652 = vmatprep.subr.bf16.mxu0 0
        %1653 = vmatpush1.bf16.msra.mxu0 %v1009
        %1654 = vmatprep.subr.bf16.mxu0 0
        %1655 = vmatpush1.bf16.msra.mxu0 %v1010
        %1656 = vmatprep.subr.bf16.mxu0 0
        %1657 = vmatpush1.bf16.msra.mxu0 0
        %1658 = vmatprep.subr.bf16.mxu0 0
        %1659 = vmatpush1.bf16.msra.mxu0 0
        %1660 = vmatprep.subr.bf16.mxu0 0
        %1661 = vmatpush1.bf16.msra.mxu0 0
        %1662 = vmatprep.subr.bf16.mxu0 0
        %1663 = vmatpush1.bf16.msra.mxu0 0
        %1664 = vmatprep.subr.bf16.mxu0 0
        %1665 = vmatpush1.bf16.msra.mxu0 0
        %1666 = vmatprep.subr.bf16.mxu0 0
        %1667 = vmatpush1.bf16.msra.mxu0 0
        %1668 = vmatprep.subr.bf16.mxu0 0
        %1669 = vmatpush1.bf16.msra.mxu0 0
        %1670 = vmatprep.subr.bf16.mxu0 0
        %1671 = vmatpush1.bf16.msra.mxu0 0
        %1672 = vmatprep.subr.bf16.mxu0 0
        %1673 = vmatpush1.bf16.msra.mxu0 0
        %1674 = vmatprep.subr.bf16.mxu0 0
        %1675 = vmatpush1.bf16.msra.mxu0 0
        %1676 = vmatprep.subr.bf16.mxu0 0
        %1677 = vmatpush1.bf16.msra.mxu0 0
        %1678 = vmatprep.subr.bf16.mxu0 0
        %1679 = vmatpush1.bf16.msra.mxu0 0
        %1680 = vmatprep.mubr.bf16.mxu0 0
        %1681 = vmatmul.mubr.bf16.gmra.mrb[0].mxu0 %v1601
        %v1682 = vpop.f32.mrb[0].mxu0
        %v1683 = vadd.f32 0.0, %v1682
        %v1684 = vpop.f32.mrb[0].mxu0
        %v1685 = vpop.f32.mrb[0].mxu0
        %v1686 = vadd.f32 0.0, %v1685
        %v1687 = vpop.f32.mrb[0].mxu0
        %1688 = vmatprep.mubr.bf16.mxu0 0
        %1689 = vmatmul.mubr.bf16.gmra.mrb[0].mxu0 %v1604
        %v1690 = vpop.f32.mrb[0].mxu0
        %v1691 = vadd.f32 0.0, %v1690
        %v1692 = vpop.f32.mrb[0].mxu0
        %v1693 = vpop.f32.mrb[0].mxu0
        %v1694 = vadd.f32 0.0, %v1693
        %v1695 = vpop.f32.mrb[0].mxu0
        %1696 = vmatprep.mubr.bf16.mxu0 0
        %1697 = vmatmul.mubr.bf16.gmra.mrb[0].mxu0 %v1607
        %v1698 = vpop.f32.mrb[0].mxu0
        %v1699 = vadd.f32 0.0, %v1698
        %v1700 = vpop.f32.mrb[0].mxu0
        %v1701 = vpop.f32.mrb[0].mxu0
        %v1702 = vadd.f32 0.0, %v1701
        %v1703 = vpop.f32.mrb[0].mxu0
        %1704 = vmatprep.mubr.bf16.mxu0 0
        %1705 = vmatmul.mubr.bf16.gmra.mrb[0].mxu0 %v1610
        %v1706 = vpop.f32.mrb[0].mxu0
        %v1707 = vadd.f32 0.0, %v1706
        %v1708 = vpop.f32.mrb[0].mxu0
        %v1709 = vpop.f32.mrb[0].mxu0
        %v1710 = vadd.f32 0.0, %v1709
        %v1711 = vpop.f32.mrb[0].mxu0
        %1712 = vmatprep.mubr.bf16.mxu0 0
        %1713 = vmatmul.mubr.bf16.gmra.mrb[0].mxu0 %v1613
        %v1714 = vpop.f32.mrb[0].mxu0
        %v1715 = vadd.f32 0.0, %v1714
        %v1716 = vpop.f32.mrb[0].mxu0
        %v1717 = vpop.f32.mrb[0].mxu0
        %v1718 = vadd.f32 0.0, %v1717
        %v1719 = vpop.f32.mrb[0].mxu0
        %1720 = vmatprep.mubr.bf16.mxu0 0
        %1721 = vmatmul.mubr.bf16.gmra.mrb[0].mxu0 %v1616
        %v1722 = vpop.f32.mrb[0].mxu0
        %v1723 = vadd.f32 0.0, %v1722
        %v1724 = vpop.f32.mrb[0].mxu0
        %v1725 = vpop.f32.mrb[0].mxu0
        %v1726 = vadd.f32 0.0, %v1725
        %v1727 = vpop.f32.mrb[0].mxu0
        %1728 = vmatprep.mubr.bf16.mxu0 0
        %1729 = vmatmul.mubr.bf16.gmra.mrb[0].mxu0 %v1619
        %v1730 = vpop.f32.mrb[0].mxu0
        %v1731 = vadd.f32 0.0, %v1730
        %v1732 = vpop.f32.mrb[0].mxu0
        %v1733 = vpop.f32.mrb[0].mxu0
        %v1734 = vadd.f32 0.0, %v1733
        %v1735 = vpop.f32.mrb[0].mxu0
        %1736 = vmatprep.mubr.bf16.mxu0 0
        %1737 = vmatmul.mubr.bf16.gmra.mrb[0].mxu0 %v1622
        %v1738 = vpop.f32.mrb[0].mxu0
        %v1739 = vadd.f32 0.0, %v1738
        %v1740 = vpop.f32.mrb[0].mxu0
        %v1741 = vpop.f32.mrb[0].mxu0
        %v1742 = vadd.f32 0.0, %v1741
        %v1743 = vpop.f32.mrb[0].mxu0
        %1744 = vmatprep.mubr.bf16.mxu0 0
        %1745 = vmatmul.mubr.bf16.gmra.mrb[0].mxu0 %v1625
        %v1746 = vpop.f32.mrb[0].mxu0
        %v1747 = vadd.f32 0.0, %v1746
        %v1748 = vpop.f32.mrb[0].mxu0
        %v1749 = vpop.f32.mrb[0].mxu0
        %v1750 = vadd.f32 0.0, %v1749
        %v1751 = vpop.f32.mrb[0].mxu0
        %1752 = vmatprep.mubr.bf16.mxu0 0
        %1753 = vmatmul.mubr.bf16.gmra.mrb[0].mxu0 %v1628
        %v1754 = vpop.f32.mrb[0].mxu0
        %v1755 = vadd.f32 0.0, %v1754
        %v1756 = vpop.f32.mrb[0].mxu0
        %v1757 = vpop.f32.mrb[0].mxu0
        %v1758 = vadd.f32 0.0, %v1757
        %v1759 = vpop.f32.mrb[0].mxu0
        %1760 = vmatprep.mubr.bf16.mxu0 0
        %1761 = vmatmul.mubr.bf16.gmra.mrb[0].mxu0 %v1631
        %v1762 = vpop.f32.mrb[0].mxu0
        %v1763 = vadd.f32 0.0, %v1762
        %v1764 = vpop.f32.mrb[0].mxu0
        %v1765 = vpop.f32.mrb[0].mxu0
        %v1766 = vadd.f32 0.0, %v1765
        %v1767 = vpop.f32.mrb[0].mxu0
        %1768 = vmatprep.mubr.bf16.mxu0 0
        %1769 = vmatmul.mubr.bf16.gmra.mrb[0].mxu0 %v1634
        %v1770 = vpop.f32.mrb[0].mxu0
        %v1771 = vadd.f32 0.0, %v1770
        %v1772 = vpop.f32.mrb[0].mxu0
        %v1773 = vpop.f32.mrb[0].mxu0
        %v1774 = vadd.f32 0.0, %v1773
        %v1775 = vpop.f32.mrb[0].mxu0
        %1776 = vmatprep.mubr.bf16.mxu0 0
        %1777 = vmatmul.mubr.bf16.gmra.mrb[0].mxu0 %v1637
        %v1778 = vpop.f32.mrb[0].mxu0
        %v1779 = vadd.f32 0.0, %v1778
        %v1780 = vpop.f32.mrb[0].mxu0
        %v1781 = vpop.f32.mrb[0].mxu0
        %v1782 = vadd.f32 0.0, %v1781
        %v1783 = vpop.f32.mrb[0].mxu0
        %1784 = vmatprep.mubr.bf16.mxu0 0
        %1785 = vmatmul.mubr.bf16.gmra.mrb[0].mxu0 %v1640
        %v1786 = vpop.f32.mrb[0].mxu0
        %v1787 = vadd.f32 0.0, %v1786
        %v1788 = vpop.f32.mrb[0].mxu0
        %v1789 = vpop.f32.mrb[0].mxu0
        %v1790 = vadd.f32 0.0, %v1789
        %v1791 = vpop.f32.mrb[0].mxu0
        %1792 = vmatprep.mubr.bf16.mxu0 0
        %1793 = vmatmul.mubr.bf16.gmra.mrb[0].mxu0 %v1643
        %v1794 = vpop.f32.mrb[0].mxu0
        %v1795 = vadd.f32 0.0, %v1794
        %v1796 = vpop.f32.mrb[0].mxu0
        %v1797 = vpop.f32.mrb[0].mxu0
        %v1798 = vadd.f32 0.0, %v1797
        %v1799 = vpop.f32.mrb[0].mxu0
        %1800 = vmatprep.mubr.bf16.mxu0 0
        %1801 = vmatmul.mubr.bf16.gmra.mrb[0].mxu0 %v1646
        %v1802 = vpop.f32.mrb[0].mxu0
        %v1803 = vadd.f32 0.0, %v1802
        %v1804 = vpop.f32.mrb[0].mxu0
        %v1805 = vpop.f32.mrb[0].mxu0
        %v1806 = vadd.f32 0.0, %v1805
        %v1807 = vpop.f32.mrb[0].mxu0
        %1808 = vdwg.mxu0
        %v1809 = vadd.f32 %v1552, %v1683
        %v1810 = vadd.f32 %v1553, %v1686
        %v1811 = vadd.f32 %v1554, %v1691
        %v1812 = vadd.f32 %v1555, %v1694
        %v1813 = vadd.f32 %v1556, %v1699
        %v1814 = vadd.f32 %v1557, %v1702
        %v1815 = vadd.f32 %v1558, %v1707
        %v1816 = vadd.f32 %v1559, %v1710
        %v1817 = vadd.f32 %v1560, %v1715
        %v1818 = vadd.f32 %v1561, %v1718
        %v1819 = vadd.f32 %v1562, %v1723
        %v1820 = vadd.f32 %v1563, %v1726
        %v1821 = vadd.f32 %v1564, %v1731
        %v1822 = vadd.f32 %v1565, %v1734
        %v1823 = vadd.f32 %v1566, %v1739
        %v1824 = vadd.f32 %v1567, %v1742
        %v1825 = vadd.f32 %v1568, %v1747
        %v1826 = vadd.f32 %v1569, %v1750
        %v1827 = vadd.f32 %v1570, %v1755
        %v1828 = vadd.f32 %v1571, %v1758
        %v1829 = vadd.f32 %v1572, %v1763
        %v1830 = vadd.f32 %v1573, %v1766
        %v1831 = vadd.f32 %v1574, %v1771
        %v1832 = vadd.f32 %v1575, %v1774
        %v1833 = vadd.f32 %v1576, %v1779
        %v1834 = vadd.f32 %v1577, %v1782
        %v1835 = vadd.f32 %v1578, %v1787
        %v1836 = vadd.f32 %v1579, %v1790
        %v1837 = vadd.f32 %v1580, %v1795
        %v1838 = vadd.f32 %v1581, %v1798
        %v1839 = vadd.f32 %v1582, %v1803
        %v1840 = vadd.f32 %v1583, %v1806
        %1841 = vst.msk [vmem:[#allocation5] sm:$0xff] %vm1027, %v1809
        %1842 = vst.msk [vmem:[#allocation5 + $0x8] sm:$0xff] %vm1027, %v1810
        %1843 = vst.msk [vmem:[#allocation5 + $0x10] sm:$0xff] %vm1027, %v1811
        %1844 = vst.msk [vmem:[#allocation5 + $0x18] sm:$0xff] %vm1027, %v1812
        %1845 = vst.msk [vmem:[#allocation5 + $0x20] sm:$0xff] %vm1027, %v1813
        %1846 = vst.msk [vmem:[#allocation5 + $0x28] sm:$0xff] %vm1027, %v1814
        %1847 = vst.msk [vmem:[#allocation5 + $0x30] sm:$0xff] %vm1027, %v1815
        %1848 = vst.msk [vmem:[#allocation5 + $0x38] sm:$0xff] %vm1027, %v1816
        %1849 = vst.msk [vmem:[#allocation5 + $0x40] sm:$0xff] %vm1027, %v1817
        %1850 = vst.msk [vmem:[#allocation5 + $0x48] sm:$0xff] %vm1027, %v1818
        %1851 = vst.msk [vmem:[#allocation5 + $0x50] sm:$0xff] %vm1027, %v1819
        %1852 = vst.msk [vmem:[#allocation5 + $0x58] sm:$0xff] %vm1027, %v1820
        %1853 = vst.msk [vmem:[#allocation5 + $0x60] sm:$0xff] %vm1027, %v1821
        %1854 = vst.msk [vmem:[#allocation5 + $0x68] sm:$0xff] %vm1027, %v1822
        %1855 = vst.msk [vmem:[#allocation5 + $0x70] sm:$0xff] %vm1027, %v1823
        %1856 = vst.msk [vmem:[#allocation5 + $0x78] sm:$0xff] %vm1027, %v1824
        %1857 = vst.msk [vmem:[#allocation5 + $0x80] sm:$0xff] %vm1027, %v1825
        %1858 = vst.msk [vmem:[#allocation5 + $0x88] sm:$0xff] %vm1027, %v1826
        %1859 = vst.msk [vmem:[#allocation5 + $0x90] sm:$0xff] %vm1027, %v1827
        %1860 = vst.msk [vmem:[#allocation5 + $0x98] sm:$0xff] %vm1027, %v1828
        %1861 = vst.msk [vmem:[#allocation5 + $0xa0] sm:$0xff] %vm1027, %v1829
        %1862 = vst.msk [vmem:[#allocation5 + $0xa8] sm:$0xff] %vm1027, %v1830
        %1863 = vst.msk [vmem:[#allocation5 + $0xb0] sm:$0xff] %vm1027, %v1831
        %1864 = vst.msk [vmem:[#allocation5 + $0xb8] sm:$0xff] %vm1027, %v1832
        %1865 = vst.msk [vmem:[#allocation5 + $0xc0] sm:$0xff] %vm1027, %v1833
        %1866 = vst.msk [vmem:[#allocation5 + $0xc8] sm:$0xff] %vm1027, %v1834
        %1867 = vst.msk [vmem:[#allocation5 + $0xd0] sm:$0xff] %vm1027, %v1835
        %1868 = vst.msk [vmem:[#allocation5 + $0xd8] sm:$0xff] %vm1027, %v1836
        %1869 = vst.msk [vmem:[#allocation5 + $0xe0] sm:$0xff] %vm1027, %v1837
        %1870 = vst.msk [vmem:[#allocation5 + $0xe8] sm:$0xff] %vm1027, %v1838
        %1871 = vst.msk [vmem:[#allocation5 + $0xf0] sm:$0xff] %vm1027, %v1839
        %1872 = vst.msk [vmem:[#allocation5 + $0xf8] sm:$0xff] %vm1027, %v1840
        %1873 = vst.msk [vmem:[#allocation6] sm:$0x1] %vm1509, %v1324
        %p1874 = scmp.eq.s32.totalorder %s25, 3
        // Predicated region
        $region49: #{tpu_custom_call.1} parent=43 // pred_check
          %p1875 = pneg %p1874
        $region50: #{tpu_custom_call.1} parent=43 // pred_check_branch
          %1877 = sbr.rel (%p1875) target = $region52
        $region51: #{tpu_custom_call.1} parent=43 // pred_region
          %v1878 = vld [vmem:[%s4] sm:$0xf]
          %v1879 = vld [vmem:[#allocation5] sm:$0xff]
          %v1880 = vld [vmem:[#allocation5 + $0x8] sm:$0xff]
          %v1881 = vld [vmem:[#allocation5 + $0x10] sm:$0xff]
          %v1882 = vld [vmem:[#allocation5 + $0x18] sm:$0xff]
          %v1883 = vld [vmem:[#allocation5 + $0x20] sm:$0xff]
          %v1884 = vld [vmem:[#allocation5 + $0x28] sm:$0xff]
          %v1885 = vld [vmem:[#allocation5 + $0x30] sm:$0xff]
          %v1886 = vld [vmem:[#allocation5 + $0x38] sm:$0xff]
          %v1887 = vld [vmem:[#allocation5 + $0x40] sm:$0xff]
          %v1888 = vld [vmem:[#allocation5 + $0x48] sm:$0xff]
          %v1889 = vld [vmem:[#allocation5 + $0x50] sm:$0xff]
          %v1890 = vld [vmem:[#allocation5 + $0x58] sm:$0xff]
          %v1891 = vld [vmem:[#allocation5 + $0x60] sm:$0xff]
          %v1892 = vld [vmem:[#allocation5 + $0x68] sm:$0xff]
          %v1893 = vld [vmem:[#allocation5 + $0x70] sm:$0xff]
          %v1894 = vld [vmem:[#allocation5 + $0x78] sm:$0xff]
          %v1895 = vld [vmem:[#allocation5 + $0x80] sm:$0xff]
          %v1896 = vld [vmem:[#allocation5 + $0x88] sm:$0xff]
          %v1897 = vld [vmem:[#allocation5 + $0x90] sm:$0xff]
          %v1898 = vld [vmem:[#allocation5 + $0x98] sm:$0xff]
          %v1899 = vld [vmem:[#allocation5 + $0xa0] sm:$0xff]
          %v1900 = vld [vmem:[#allocation5 + $0xa8] sm:$0xff]
          %v1901 = vld [vmem:[#allocation5 + $0xb0] sm:$0xff]
          %v1902 = vld [vmem:[#allocation5 + $0xb8] sm:$0xff]
          %v1903 = vld [vmem:[#allocation5 + $0xc0] sm:$0xff]
          %v1904 = vld [vmem:[#allocation5 + $0xc8] sm:$0xff]
          %v1905 = vld [vmem:[#allocation5 + $0xd0] sm:$0xff]
          %v1906 = vld [vmem:[#allocation5 + $0xd8] sm:$0xff]
          %v1907 = vld [vmem:[#allocation5 + $0xe0] sm:$0xff]
          %v1908 = vld [vmem:[#allocation5 + $0xe8] sm:$0xff]
          %v1909 = vld [vmem:[#allocation5 + $0xf0] sm:$0xff]
          %v1910 = vld [vmem:[#allocation5 + $0xf8] sm:$0xff]
          %v1912 = vsel %vm1027, %v1878, 0
          %v1915 = vsel %vm1027, %v1879, 0
          %v1918 = vsel %vm1027, %v1880, 0
          %v1921 = vsel %vm1027, %v1881, 0
          %v1924 = vsel %vm1027, %v1882, 0
          %v1927 = vsel %vm1027, %v1883, 0
          %v1930 = vsel %vm1027, %v1884, 0
          %v1933 = vsel %vm1027, %v1885, 0
          %v1936 = vsel %vm1027, %v1886, 0
          %v1939 = vsel %vm1027, %v1887, 0
          %v1942 = vsel %vm1027, %v1888, 0
          %v1945 = vsel %vm1027, %v1889, 0
          %v1948 = vsel %vm1027, %v1890, 0
          %v1951 = vsel %vm1027, %v1891, 0
          %v1954 = vsel %vm1027, %v1892, 0
          %v1957 = vsel %vm1027, %v1893, 0
          %v1960 = vsel %vm1027, %v1894, 0
          %v1963 = vsel %vm1027, %v1895, 0
          %v1966 = vsel %vm1027, %v1896, 0
          %v1969 = vsel %vm1027, %v1897, 0
          %v1972 = vsel %vm1027, %v1898, 0
          %v1975 = vsel %vm1027, %v1899, 0
          %v1978 = vsel %vm1027, %v1900, 0
          %v1981 = vsel %vm1027, %v1901, 0
          %v1984 = vsel %vm1027, %v1902, 0
          %v1987 = vsel %vm1027, %v1903, 0
          %v1990 = vsel %vm1027, %v1904, 0
          %v1993 = vsel %vm1027, %v1905, 0
          %v1996 = vsel %vm1027, %v1906, 0
          %v1999 = vsel %vm1027, %v1907, 0
          %v2002 = vsel %vm1027, %v1908, 0
          %v2005 = vsel %vm1027, %v1909, 0
          %v2008 = vsel %vm1027, %v1910, 0
          %2010 = vmatprep.subr.mxu0 0.0
          %2011 = vmatpush1.xpose.msra.mxu0 %v1915
          %2012 = vmatprep.subr.mxu0 0.0
          %2013 = vmatpush1.xpose.msra.mxu0 %v1918
          %2014 = vmatprep.subr.mxu0 0.0
          %2015 = vmatpush1.xpose.msra.mxu0 %v1921
          %2016 = vmatprep.subr.mxu0 0.0
          %2017 = vmatpush1.xpose.msra.mxu0 %v1924
          %2018 = vmatprep.subr.mxu0 0.0
          %2019 = vmatpush1.xpose.msra.mxu0 %v1927
          %2020 = vmatprep.subr.mxu0 0.0
          %2021 = vmatpush1.xpose.msra.mxu0 %v1930
          %2022 = vmatprep.subr.mxu0 0.0
          %2023 = vmatpush1.xpose.msra.mxu0 %v1933
          %2024 = vmatprep.subr.mxu0 0.0
          %2025 = vmatpush1.xpose.msra.mxu0 %v1936
          %2026 = vmatprep.subr.mxu0 0.0
          %2027 = vmatpush1.xpose.msra.mxu0 %v1939
          %2028 = vmatprep.subr.mxu0 0.0
          %2029 = vmatpush1.xpose.msra.mxu0 %v1942
          %2030 = vmatprep.subr.mxu0 0.0
          %2031 = vmatpush1.xpose.msra.mxu0 %v1945
          %2032 = vmatprep.subr.mxu0 0.0
          %2033 = vmatpush1.xpose.msra.mxu0 %v1948
          %2034 = vmatprep.subr.mxu0 0.0
          %2035 = vmatpush1.xpose.msra.mxu0 %v1951
          %2036 = vmatprep.subr.mxu0 0.0
          %2037 = vmatpush1.xpose.msra.mxu0 %v1954
          %2038 = vmatprep.subr.mxu0 0.0
          %2039 = vmatpush1.xpose.msra.mxu0 %v1957
          %2040 = vmatprep.subr.mxu0 0.0
          %2041 = vmatpush1.xpose.msra.mxu0 %v1960
          %2042 = vmatprep.subr.mxu0 0.0
          %2043 = vmatpush1.xpose.msra.mxu0 %v1963
          %2044 = vmatprep.subr.mxu0 0.0
          %2045 = vmatpush1.xpose.msra.mxu0 %v1966
          %2046 = vmatprep.subr.mxu0 0.0
          %2047 = vmatpush1.xpose.msra.mxu0 %v1969
          %2048 = vmatprep.subr.mxu0 0.0
          %2049 = vmatpush1.xpose.msra.mxu0 %v1972
          %2050 = vmatprep.subr.mxu0 0.0
          %2051 = vmatpush1.xpose.msra.mxu0 %v1975
          %2052 = vmatprep.subr.mxu0 0.0
          %2053 = vmatpush1.xpose.msra.mxu0 %v1978
          %2054 = vmatprep.subr.mxu0 0.0
          %2055 = vmatpush1.xpose.msra.mxu0 %v1981
          %2056 = vmatprep.subr.mxu0 0.0
          %2057 = vmatpush1.xpose.msra.mxu0 %v1984
          %2058 = vmatprep.subr.mxu0 0.0
          %2059 = vmatpush1.xpose.msra.mxu0 %v1987
          %2060 = vmatprep.subr.mxu0 0.0
          %2061 = vmatpush1.xpose.msra.mxu0 %v1990
          %2062 = vmatprep.subr.mxu0 0.0
          %2063 = vmatpush1.xpose.msra.mxu0 %v1993
          %2064 = vmatprep.subr.mxu0 0.0
          %2065 = vmatpush1.xpose.msra.mxu0 %v1996
          %2066 = vmatprep.subr.mxu0 0.0
          %2067 = vmatpush1.xpose.msra.mxu0 %v1999
          %2068 = vmatprep.subr.mxu0 0.0
          %2069 = vmatpush1.xpose.msra.mxu0 %v2002
          %2070 = vmatprep.subr.mxu0 0.0
          %2071 = vmatpush1.xpose.msra.mxu0 %v2005
          %2072 = vmatprep.subr.mxu0 0.0
          %2073 = vmatpush1.xpose.msra.mxu0 %v2008
          %2074 = vmatprep.mubr.f32.mxu0 0.0
          %2075 = vmatmul.mubr.f32.gmra.mrb[0].mxu0 %v1912
          %v2076 = vpop.f32.mrb[0].mxu0
          %v2077 = vadd.f32 0.0, %v2076
          %v2078 = vpop.f32.mrb[0].mxu0
          %v2079 = vadd.f32 0.0, %v2078
          %2080 = vdwg.mxu0
          %v2081 = vld [vmem:[#allocation7] sm:$0x1]
          %v2082 = vrcp.pop %v2081
          %v2084 = vlaneseq
          %v2085 = vshrl.u32 %v2084, 7
          %v2086 = vsub.s32 0, %v2085
          %v2087 = vrot.slane %v2082, %v2086
          %2088 = vset.pattern.permute.xlu0 0
          %2089 = vperm.xlu0 %2088, %v2087
          %v2090 = vpop.permute.xlu0 %2089
          %v2092 = vmul.f32 %v2077, %v2090
          %v2093 = vmul.f32 %v2079, %v2090
          %v2094 = vld [vmem:[%s5] sm:$0xf]
          %2096 = vset.pattern.permute.xlu0 0
          %2097 = vperm.xlu0 %2096, %v2094
          %v2098 = vpop.permute.xlu0 %2097
          %v2100 = vadd.f32 %v2092, %v2098
          %v2101 = vadd.f32 %v2093, %v2098
          %v2102 = vld [vmem:[%s281] sm:$0xff]
          %v2105 = vcombine.low %v2100, %v2101
          %v2107 = vmul.f32 %v2102, %v2105
          %v2108 = vadd.f32 %v2107, %v2102
          %2109 = vst [vmem:[%s271] sm:$0xff] %v2108
        $region52: #{tpu_custom_call.1} parent=43 // pred_fallthru
          _
        %s2110 = sand.u32 %s176, 1
        %s2111 = scalar_lea.sflag [#allocation9], %s2110
        %s2112 = sand.u32 %s176, 1
        %s2113 = smul.addr %s2112, 8
        %s2114 = scalar_lea.vmem [#allocation8], %s2113
        // Predicated region
        $region53: #{tpu_custom_call.1} parent=43 // pred_check
          %p2115 = pneg %p186
        $region54: #{tpu_custom_call.1} parent=43 // pred_check_branch
          %2117 = sbr.rel (%p2115) target = $region56
        $region55: #{tpu_custom_call.1} parent=43 // pred_region
          %s2119 = ssub.s32 128, 128
          %2120 = vsyncadd %s2111, %s2119
          %s2121 = smul.addr %s24, 2
          %s2122 = smul.addr %s2121, 64
          %s2123 = scalar_lea.hbm %s6, %s2122
          %s2125 = sshll.u32 %s2114, 4
          %s2126 = int_to_ptr.vmem [resolvable:$true] %s2125
          %2128 = dma.vmem_to_hbm [thread:$0]  %s2126, 128, %s2123, %s2111
        $region56: #{tpu_custom_call.1} parent=43 // pred_fallthru
          _
      $region44: #{tpu_custom_call.1} parent=5 // pred_fallthru
        _
      %p2129 = scmp.le.s32.totalorder 2, %s15
      // Predicated region
      $region57: #{tpu_custom_call.1} parent=5 // pred_check
        %p2130 = pneg %p2129
      $region58: #{tpu_custom_call.1} parent=5 // pred_check_branch
        %2132 = sbr.rel (%p2130) target = $region60
      $region59: #{tpu_custom_call.1} parent=5 // pred_region
        %s2133 = ssub.s32 %s15, 2
        // Predicated region
        $region61: #{tpu_custom_call.1} parent=59 // pred_check
          %p2134 = pneg %p192
        $region62: #{tpu_custom_call.1} parent=59 // pred_check_branch
          %2136 = sbr.rel (%p2134) target = $region64
        $region63: #{tpu_custom_call.1} parent=59 // pred_region
          %s2137 = sand.u32 %s177, 1
          %s2138 = scalar_lea.sflag [#allocation9], %s2137
          %s2139 = sand.u32 %s177, 1
          %s2140 = smul.addr %s2139, 8
          %s2141 = scalar_lea.vmem [#allocation8], %s2140
          %2142 = dma.done %s2138, 128
        $region64: #{tpu_custom_call.1} parent=59 // pred_fallthru
          _
      $region60: #{tpu_custom_call.1} parent=5 // pred_fallthru
        _
    $region6: #{tpu_custom_call.1} parent=1 // loop_footer
      %s19 = sadd.s32 1, %s15
    $region7: #{tpu_custom_call.1} parent=1 // loop_footer_branch
      %14 = sbr.rel target = $region3
    $region8: #{tpu_custom_call.1} parent=1 // loop_exit
      _
    %2143 = vsyncpa [#allocation9], 1
    %s2144 = scalar_lea.sflag [#allocation9], 1
    %2145 = vsyncpa %s2144, 1

</llo_original>
